<compile_context>
chip_gen: v7x
topology: tpu7x:2x2x1
jax: 0.10.0
libtpu: 0.0.40
codegen_flags: <defaults>
</compile_context>

<pallas_src>
import jax
import jax.numpy as jnp
from jax.experimental import pallas as pl
from jax.experimental.pallas import tpu as pltpu

# ----- model hyperparameters (small, consistent with the module) -----
BATCH = 2
SEQ = 8
INPUT_DIM = 16
LSTM_DIM = 32
HIDDEN_DIM = 32
OUTPUT_DIM = 4
N_LAYERS = 2
B_PAD = 8       # batch padded to one full sublane tile
OUT_PAD = 128   # OUTPUT_DIM padded to a full lane width for an unmasked store


def lstmnet_kernel(x_ref, w_ih0_ref, b_ref, w_blk_ref,
                   fc1_wa_ref, fc1_wb_ref, fc1_b_ref,
                   fc2_w_ref, fc2_b_ref, out_ref):
    """Whole LSTMNet forward in one kernel invocation (no grid, all in VMEM)."""
    H = LSTM_DIM
    BP = B_PAD

    # Hoisted layer-0 input projection for all SEQ+1 clock blocks, done as one
    # MXU matmul.  Row block k holds [x_k @ w_ih0^T + (b_ih0+b_hh0) | b1].
    x_proj = jnp.dot(x_ref[...], w_ih0_ref[...],
                     preferred_element_type=jnp.float32) + b_ref[...]   # (72, 256)

    w_blk = w_blk_ref[...]        # (64, 256) bf16, loaded once

    h0 = jnp.zeros((BP, H), jnp.float32)
    c0 = jnp.zeros((BP, H), jnp.float32)
    h1 = jnp.zeros((BP, H), jnp.float32)
    c1 = jnp.zeros((BP, H), jnp.float32)
    h1_steps = []                 # layer-1 hidden states h1_0 .. h1_{SEQ-1}

    # Wavefront over SEQ+1 clocks: clock k runs layer-0 step k (k < SEQ) and
    # layer-1 step k-1 (k >= 1), both fed by ONE fused 256-wide gate matmul.
    for k in range(SEQ + 1):
        hcat = jnp.concatenate([h0, h1], axis=1).astype(jnp.bfloat16)   # (8, 64)
        # v7x note: add kept adjacent to the dot so the MRB accumulate path
        # can absorb it; harmless (separate VALU add) on v5e/v6e.
        z = x_proj[k * BP:(k + 1) * BP, :] + jnp.dot(
            hcat, w_blk, preferred_element_type=jnp.float32)            # (8, 256)

        # One sigmoid and one tanh over the whole 256-lane gate vector
        # (2 EUP pushes per clock for BOTH layers), then 32-lane gate slices.
        s_act = jax.nn.sigmoid(z)
        t_act = jnp.tanh(z)

        if k >= 1:                      # layer-1 step k-1 (uses pre-update h0)
            i1 = s_act[:, 4 * H:5 * H]
            f1 = s_act[:, 5 * H:6 * H]
            g1 = t_act[:, 6 * H:7 * H]
            o1 = s_act[:, 7 * H:8 * H]
            c1 = f1 * c1 + i1 * g1
            h1 = o1 * jnp.tanh(c1)
            h1_steps.append(h1)

        if k < SEQ:                     # layer-0 step k
            i0 = s_act[:, 0 * H:1 * H]
            f0 = s_act[:, 1 * H:2 * H]
            g0 = t_act[:, 2 * H:3 * H]
            o0 = s_act[:, 3 * H:4 * H]
            c0 = f0 * c0 + i0 * g0
            h0 = o0 * jnp.tanh(c0)

    # Head: out[:, -2:, :].view(B, -1) == [h1_{S-2} | h1_{S-1}] per row; tanh
    # commutes with the concat, and fc1 is pre-split -> no lane concat needed.
    h_m2 = jnp.tanh(h1_steps[-2])       # (8, H)
    h_m1 = jnp.tanh(h1_steps[-1])       # (8, H)
    # TODO(synk): nn.Dropout(p=0.5) is identity at inference; no mask applied.
    hid = jnp.tanh(
        jnp.dot(h_m2, fc1_wa_ref[...], preferred_element_type=jnp.float32)
        + jnp.dot(h_m1, fc1_wb_ref[...], preferred_element_type=jnp.float32)
        + fc1_b_ref[...])                # (8, HIDDEN_DIM)
    out = (jnp.dot(hid, fc2_w_ref[...], preferred_element_type=jnp.float32)
           + fc2_b_ref[...])             # (8, OUT_PAD): lane-dense, sublane-full store
    out_ref[...] = out.astype(out_ref.dtype)


def init_params(key):
    """Deterministic N(0,1) init, PyTorch-layout params (matches init_weights)."""
    params = []
    for layer in range(N_LAYERS):
        in_dim = INPUT_DIM if layer == 0 else LSTM_DIM
        key, k1, k2, k3, k4 = jax.random.split(key, 5)
        params.append(jax.random.normal(k1, (4 * LSTM_DIM, in_dim), jnp.float32))    # w_ih
        params.append(jax.random.normal(k2, (4 * LSTM_DIM, LSTM_DIM), jnp.float32))  # w_hh
        params.append(jax.random.normal(k3, (1, 4 * LSTM_DIM), jnp.float32))          # b_ih
        params.append(jax.random.normal(k4, (1, 4 * LSTM_DIM), jnp.float32))          # b_hh
    key, k1, k2, k3, k4 = jax.random.split(key, 5)
    params.append(jax.random.normal(k1, (HIDDEN_DIM, 2 * LSTM_DIM), jnp.float32))      # fc1_w
    params.append(jax.random.normal(k2, (1, HIDDEN_DIM), jnp.float32))                 # fc1_b
    params.append(jax.random.normal(k3, (OUTPUT_DIM, HIDDEN_DIM), jnp.float32))        # fc2_w
    params.append(jax.random.normal(k4, (1, OUTPUT_DIM), jnp.float32))                 # fc2_b
    return params


@jax.jit
def lstmnet_forward(x, *params):
    assert x.ndim == 3, f"Expected 3-dim input, got {x.ndim}"
    B, S, D = x.shape
    assert S == SEQ and D == INPUT_DIM and B <= B_PAD
    H = LSTM_DIM

    # ---- host-side layout plumbing (done once by XLA, outside the kernel) ----
    # Time-major, batch padded to a full 8-row sublane tile, plus one trailing
    # zero clock block so the wavefront's final clock reads a valid addend row.
    x_pad = jnp.zeros((S + 1, B_PAD, D), jnp.float32)
    x_pad = x_pad.at[:S, :B, :].set(jnp.transpose(x, (1, 0, 2)))
    x_tm = x_pad.reshape((S + 1) * B_PAD, D)

    (w_ih0, w_hh0, b_ih0, b_hh0,
     w_ih1, w_hh1, b_ih1, b_hh1,
     fc1_w, fc1_b, fc2_w, fc2_b) = params

    # Hoisted layer-0 projection weight padded to 8H = 256 lanes (layer-1 half
    # of the addend is just the merged layer-1 bias).
    w_ih0_pad = jnp.concatenate(
        [w_ih0.T, jnp.zeros((D, 4 * H), jnp.float32)], axis=1)          # (16, 256)
    b_pad = jnp.concatenate([b_ih0 + b_hh0, b_ih1 + b_hh1], axis=1)     # (1, 256)

    # Fused wavefront recurrence weight  [[w_hh0^T, w_ih1^T], [0, w_hh1^T]],
    # pre-cast to bf16 (f32 accumulation happens on the MXU).
    w_blk = jnp.concatenate(
        [jnp.concatenate([w_hh0.T, w_ih1.T], axis=1),
         jnp.concatenate([jnp.zeros((H, 4 * H), jnp.float32), w_hh1.T], axis=1)],
        axis=0).astype(jnp.bfloat16)                                     # (64, 256)

    fc1_wa = fc1_w[:, :H].T      # (H, HIDDEN) -> multiplies h1_{S-2}
    fc1_wb = fc1_w[:, H:].T      # (H, HIDDEN) -> multiplies h1_{S-1}
    fc2_w_pad = jnp.zeros((HIDDEN_DIM, OUT_PAD), jnp.float32).at[:, :OUTPUT_DIM].set(fc2_w.T)
    fc2_b_pad = jnp.zeros((1, OUT_PAD), jnp.float32).at[:, :OUTPUT_DIM].set(fc2_b)

    kernel_inputs = [x_tm, w_ih0_pad, b_pad, w_blk,
                     fc1_wa, fc1_wb, fc1_b, fc2_w_pad, fc2_b_pad]

    # Single invocation, everything resident in VMEM: no grid, no index_maps,
    # no pipelining machinery (~80 KB total footprint, fine on v5e/v6e/v7x).
    vmem_spec = pl.BlockSpec(memory_space=pltpu.MemorySpace.VMEM)
    out = pl.pallas_call(
        lstmnet_kernel,
        out_shape=jax.ShapeDtypeStruct((B_PAD, OUT_PAD), jnp.float32),
        in_specs=[vmem_spec] * len(kernel_inputs),
        out_specs=vmem_spec,
    )(*kernel_inputs)

    # Strip batch/lane padding, then torch.unsqueeze(out, -1).
    return out[:B, :OUTPUT_DIM, None]


if __name__ == "__main__":
    key = jax.random.PRNGKey(0)
    key, xk = jax.random.split(key)
    x = jax.random.normal(xk, (BATCH, SEQ, INPUT_DIM), jnp.float32)
    params = init_params(key)

    y = lstmnet_forward(x, *params)
    jax.block_until_ready(y)
    assert y.shape == (BATCH, OUTPUT_DIM, 1), y.shape
    print("KERNEL_OK")
</pallas_src>

<mosaic_0001>
module attributes {stable_mosaic.version = 11 : i64} {
  func.func @lstmnet_kernel(%arg0: memref<72x16xf32, #tpu.memory_space<vmem>>, %arg1: memref<16x256xf32, #tpu.memory_space<vmem>>, %arg2: memref<1x256xf32, #tpu.memory_space<vmem>>, %arg3: memref<64x256xbf16, #tpu.memory_space<vmem>>, %arg4: memref<32x32xf32, #tpu.memory_space<vmem>>, %arg5: memref<32x32xf32, #tpu.memory_space<vmem>>, %arg6: memref<1x32xf32, #tpu.memory_space<vmem>>, %arg7: memref<32x128xf32, #tpu.memory_space<vmem>>, %arg8: memref<1x128xf32, #tpu.memory_space<vmem>>, %arg9: memref<8x128xf32, #tpu.memory_space<vmem>>) attributes {dimension_semantics = [], scalar_prefetch = 0 : i64, scratch_operands = 0 : i64, tpu.core_type = #tpu.core_type<tc>} {
    %c0 = arith.constant 0 : index
    %c0_0 = arith.constant 0 : index
    %0 = vector.load %arg0[%c0, %c0_0] : memref<72x16xf32, #tpu.memory_space<vmem>>, vector<72x16xf32>
    %c0_1 = arith.constant 0 : index
    %c0_2 = arith.constant 0 : index
    %1 = vector.load %arg1[%c0_1, %c0_2] : memref<16x256xf32, #tpu.memory_space<vmem>>, vector<16x256xf32>
    %cst = arith.constant dense<0.000000e+00> : vector<72x256xf32>
    %2 = tpu.matmul %0, %1, %cst {dimension_numbers = #tpu.dot_dimension_numbers<[1], [0], [0], [1], [0, 0, 1, 1], [], []>} : vector<72x16xf32>, vector<16x256xf32>, vector<72x256xf32> -> vector<72x256xf32>
    %c0_3 = arith.constant 0 : index
    %c0_4 = arith.constant 0 : index
    %3 = vector.load %arg2[%c0_3, %c0_4] : memref<1x256xf32, #tpu.memory_space<vmem>>, vector<1x256xf32>
    %4 = vector.broadcast %3 : vector<1x256xf32> to vector<72x256xf32>
    %5 = arith.addf %2, %4 : vector<72x256xf32>
    %c0_5 = arith.constant 0 : index
    %c0_6 = arith.constant 0 : index
    %6 = vector.load %arg3[%c0_5, %c0_6] : memref<64x256xbf16, #tpu.memory_space<vmem>>, vector<64x256xbf16>
    %cst_7 = arith.constant 0.000000e+00 : f32
    %7 = vector.broadcast %cst_7 : f32 to vector<8x32xf32>
    %cst_8 = arith.constant 0.000000e+00 : f32
    %8 = vector.broadcast %cst_8 : f32 to vector<8x32xf32>
    %cst_9 = arith.constant 0.000000e+00 : f32
    %9 = vector.broadcast %cst_9 : f32 to vector<8x32xf32>
    %cst_10 = arith.constant 0.000000e+00 : f32
    %10 = vector.broadcast %cst_10 : f32 to vector<8x32xf32>
    %11 = tpu.concatenate %7, %9 in 1 : vector<8x32xf32>, vector<8x32xf32> -> vector<8x64xf32>
    %12 = arith.truncf %11 : vector<8x64xf32> to vector<8x64xbf16>
    %13 = vector.extract_strided_slice %5 {offsets = [0, 0], sizes = [8, 256], strides = [1, 1]} : vector<72x256xf32> to vector<8x256xf32>
    %cst_11 = arith.constant dense<0.000000e+00> : vector<8x256xf32>
    %14 = tpu.matmul %12, %6, %cst_11 {dimension_numbers = #tpu.dot_dimension_numbers<[1], [0], [0], [1], [0, 0, 1, 1], [], []>} : vector<8x64xbf16>, vector<64x256xbf16>, vector<8x256xf32> -> vector<8x256xf32>
    %15 = arith.addf %13, %14 : vector<8x256xf32>
    %16 = arith.negf %15 : vector<8x256xf32>
    %17 = math.exp %16 : vector<8x256xf32>
    %cst_12 = arith.constant 1.000000e+00 : f32
    %18 = vector.broadcast %cst_12 : f32 to vector<8x256xf32>
    %19 = arith.addf %18, %17 : vector<8x256xf32>
    %20 = arith.divf %18, %19 : vector<8x256xf32>
    %21 = math.tanh %15 : vector<8x256xf32>
    %22 = vector.extract_strided_slice %20 {offsets = [0, 0], sizes = [8, 32], strides = [1, 1]} : vector<8x256xf32> to vector<8x32xf32>
    %23 = vector.extract_strided_slice %20 {offsets = [0, 32], sizes = [8, 32], strides = [1, 1]} : vector<8x256xf32> to vector<8x32xf32>
    %24 = vector.extract_strided_slice %21 {offsets = [0, 64], sizes = [8, 32], strides = [1, 1]} : vector<8x256xf32> to vector<8x32xf32>
    %25 = vector.extract_strided_slice %20 {offsets = [0, 96], sizes = [8, 32], strides = [1, 1]} : vector<8x256xf32> to vector<8x32xf32>
    %26 = arith.mulf %23, %8 : vector<8x32xf32>
    %27 = arith.mulf %22, %24 : vector<8x32xf32>
    %28 = arith.addf %26, %27 : vector<8x32xf32>
    %29 = math.tanh %28 : vector<8x32xf32>
    %30 = arith.mulf %25, %29 : vector<8x32xf32>
    %31 = tpu.concatenate %30, %9 in 1 : vector<8x32xf32>, vector<8x32xf32> -> vector<8x64xf32>
    %32 = arith.truncf %31 : vector<8x64xf32> to vector<8x64xbf16>
    %33 = vector.extract_strided_slice %5 {offsets = [8, 0], sizes = [8, 256], strides = [1, 1]} : vector<72x256xf32> to vector<8x256xf32>
    %cst_13 = arith.constant dense<0.000000e+00> : vector<8x256xf32>
    %34 = tpu.matmul %32, %6, %cst_13 {dimension_numbers = #tpu.dot_dimension_numbers<[1], [0], [0], [1], [0, 0, 1, 1], [], []>} : vector<8x64xbf16>, vector<64x256xbf16>, vector<8x256xf32> -> vector<8x256xf32>
    %35 = arith.addf %33, %34 : vector<8x256xf32>
    %36 = arith.negf %35 : vector<8x256xf32>
    %37 = math.exp %36 : vector<8x256xf32>
    %cst_14 = arith.constant 1.000000e+00 : f32
    %38 = vector.broadcast %cst_14 : f32 to vector<8x256xf32>
    %39 = arith.addf %38, %37 : vector<8x256xf32>
    %40 = arith.divf %38, %39 : vector<8x256xf32>
    %41 = math.tanh %35 : vector<8x256xf32>
    %42 = vector.extract_strided_slice %40 {offsets = [0, 128], sizes = [8, 32], strides = [1, 1]} : vector<8x256xf32> to vector<8x32xf32>
    %43 = vector.extract_strided_slice %40 {offsets = [0, 160], sizes = [8, 32], strides = [1, 1]} : vector<8x256xf32> to vector<8x32xf32>
    %44 = vector.extract_strided_slice %41 {offsets = [0, 192], sizes = [8, 32], strides = [1, 1]} : vector<8x256xf32> to vector<8x32xf32>
    %45 = vector.extract_strided_slice %40 {offsets = [0, 224], sizes = [8, 32], strides = [1, 1]} : vector<8x256xf32> to vector<8x32xf32>
    %46 = arith.mulf %43, %10 : vector<8x32xf32>
    %47 = arith.mulf %42, %44 : vector<8x32xf32>
    %48 = arith.addf %46, %47 : vector<8x32xf32>
    %49 = math.tanh %48 : vector<8x32xf32>
    %50 = arith.mulf %45, %49 : vector<8x32xf32>
    %51 = vector.extract_strided_slice %40 {offsets = [0, 0], sizes = [8, 32], strides = [1, 1]} : vector<8x256xf32> to vector<8x32xf32>
    %52 = vector.extract_strided_slice %40 {offsets = [0, 32], sizes = [8, 32], strides = [1, 1]} : vector<8x256xf32> to vector<8x32xf32>
    %53 = vector.extract_strided_slice %41 {offsets = [0, 64], sizes = [8, 32], strides = [1, 1]} : vector<8x256xf32> to vector<8x32xf32>
    %54 = vector.extract_strided_slice %40 {offsets = [0, 96], sizes = [8, 32], strides = [1, 1]} : vector<8x256xf32> to vector<8x32xf32>
    %55 = arith.mulf %52, %28 : vector<8x32xf32>
    %56 = arith.mulf %51, %53 : vector<8x32xf32>
    %57 = arith.addf %55, %56 : vector<8x32xf32>
    %58 = math.tanh %57 : vector<8x32xf32>
    %59 = arith.mulf %54, %58 : vector<8x32xf32>
    %60 = tpu.concatenate %59, %50 in 1 : vector<8x32xf32>, vector<8x32xf32> -> vector<8x64xf32>
    %61 = arith.truncf %60 : vector<8x64xf32> to vector<8x64xbf16>
    %62 = vector.extract_strided_slice %5 {offsets = [16, 0], sizes = [8, 256], strides = [1, 1]} : vector<72x256xf32> to vector<8x256xf32>
    %cst_15 = arith.constant dense<0.000000e+00> : vector<8x256xf32>
    %63 = tpu.matmul %61, %6, %cst_15 {dimension_numbers = #tpu.dot_dimension_numbers<[1], [0], [0], [1], [0, 0, 1, 1], [], []>} : vector<8x64xbf16>, vector<64x256xbf16>, vector<8x256xf32> -> vector<8x256xf32>
    %64 = arith.addf %62, %63 : vector<8x256xf32>
    %65 = arith.negf %64 : vector<8x256xf32>
    %66 = math.exp %65 : vector<8x256xf32>
    %cst_16 = arith.constant 1.000000e+00 : f32
    %67 = vector.broadcast %cst_16 : f32 to vector<8x256xf32>
    %68 = arith.addf %67, %66 : vector<8x256xf32>
    %69 = arith.divf %67, %68 : vector<8x256xf32>
    %70 = math.tanh %64 : vector<8x256xf32>
    %71 = vector.extract_strided_slice %69 {offsets = [0, 128], sizes = [8, 32], strides = [1, 1]} : vector<8x256xf32> to vector<8x32xf32>
    %72 = vector.extract_strided_slice %69 {offsets = [0, 160], sizes = [8, 32], strides = [1, 1]} : vector<8x256xf32> to vector<8x32xf32>
    %73 = vector.extract_strided_slice %70 {offsets = [0, 192], sizes = [8, 32], strides = [1, 1]} : vector<8x256xf32> to vector<8x32xf32>
    %74 = vector.extract_strided_slice %69 {offsets = [0, 224], sizes = [8, 32], strides = [1, 1]} : vector<8x256xf32> to vector<8x32xf32>
    %75 = arith.mulf %72, %48 : vector<8x32xf32>
    %76 = arith.mulf %71, %73 : vector<8x32xf32>
    %77 = arith.addf %75, %76 : vector<8x32xf32>
    %78 = math.tanh %77 : vector<8x32xf32>
    %79 = arith.mulf %74, %78 : vector<8x32xf32>
    %80 = vector.extract_strided_slice %69 {offsets = [0, 0], sizes = [8, 32], strides = [1, 1]} : vector<8x256xf32> to vector<8x32xf32>
    %81 = vector.extract_strided_slice %69 {offsets = [0, 32], sizes = [8, 32], strides = [1, 1]} : vector<8x256xf32> to vector<8x32xf32>
    %82 = vector.extract_strided_slice %70 {offsets = [0, 64], sizes = [8, 32], strides = [1, 1]} : vector<8x256xf32> to vector<8x32xf32>
    %83 = vector.extract_strided_slice %69 {offsets = [0, 96], sizes = [8, 32], strides = [1, 1]} : vector<8x256xf32> to vector<8x32xf32>
    %84 = arith.mulf %81, %57 : vector<8x32xf32>
    %85 = arith.mulf %80, %82 : vector<8x32xf32>
    %86 = arith.addf %84, %85 : vector<8x32xf32>
    %87 = math.tanh %86 : vector<8x32xf32>
    %88 = arith.mulf %83, %87 : vector<8x32xf32>
    %89 = tpu.concatenate %88, %79 in 1 : vector<8x32xf32>, vector<8x32xf32> -> vector<8x64xf32>
    %90 = arith.truncf %89 : vector<8x64xf32> to vector<8x64xbf16>
    %91 = vector.extract_strided_slice %5 {offsets = [24, 0], sizes = [8, 256], strides = [1, 1]} : vector<72x256xf32> to vector<8x256xf32>
    %cst_17 = arith.constant dense<0.000000e+00> : vector<8x256xf32>
    %92 = tpu.matmul %90, %6, %cst_17 {dimension_numbers = #tpu.dot_dimension_numbers<[1], [0], [0], [1], [0, 0, 1, 1], [], []>} : vector<8x64xbf16>, vector<64x256xbf16>, vector<8x256xf32> -> vector<8x256xf32>
    %93 = arith.addf %91, %92 : vector<8x256xf32>
    %94 = arith.negf %93 : vector<8x256xf32>
    %95 = math.exp %94 : vector<8x256xf32>
    %cst_18 = arith.constant 1.000000e+00 : f32
    %96 = vector.broadcast %cst_18 : f32 to vector<8x256xf32>
    %97 = arith.addf %96, %95 : vector<8x256xf32>
    %98 = arith.divf %96, %97 : vector<8x256xf32>
    %99 = math.tanh %93 : vector<8x256xf32>
    %100 = vector.extract_strided_slice %98 {offsets = [0, 128], sizes = [8, 32], strides = [1, 1]} : vector<8x256xf32> to vector<8x32xf32>
    %101 = vector.extract_strided_slice %98 {offsets = [0, 160], sizes = [8, 32], strides = [1, 1]} : vector<8x256xf32> to vector<8x32xf32>
    %102 = vector.extract_strided_slice %99 {offsets = [0, 192], sizes = [8, 32], strides = [1, 1]} : vector<8x256xf32> to vector<8x32xf32>
    %103 = vector.extract_strided_slice %98 {offsets = [0, 224], sizes = [8, 32], strides = [1, 1]} : vector<8x256xf32> to vector<8x32xf32>
    %104 = arith.mulf %101, %77 : vector<8x32xf32>
    %105 = arith.mulf %100, %102 : vector<8x32xf32>
    %106 = arith.addf %104, %105 : vector<8x32xf32>
    %107 = math.tanh %106 : vector<8x32xf32>
    %108 = arith.mulf %103, %107 : vector<8x32xf32>
    %109 = vector.extract_strided_slice %98 {offsets = [0, 0], sizes = [8, 32], strides = [1, 1]} : vector<8x256xf32> to vector<8x32xf32>
    %110 = vector.extract_strided_slice %98 {offsets = [0, 32], sizes = [8, 32], strides = [1, 1]} : vector<8x256xf32> to vector<8x32xf32>
    %111 = vector.extract_strided_slice %99 {offsets = [0, 64], sizes = [8, 32], strides = [1, 1]} : vector<8x256xf32> to vector<8x32xf32>
    %112 = vector.extract_strided_slice %98 {offsets = [0, 96], sizes = [8, 32], strides = [1, 1]} : vector<8x256xf32> to vector<8x32xf32>
    %113 = arith.mulf %110, %86 : vector<8x32xf32>
    %114 = arith.mulf %109, %111 : vector<8x32xf32>
    %115 = arith.addf %113, %114 : vector<8x32xf32>
    %116 = math.tanh %115 : vector<8x32xf32>
    %117 = arith.mulf %112, %116 : vector<8x32xf32>
    %118 = tpu.concatenate %117, %108 in 1 : vector<8x32xf32>, vector<8x32xf32> -> vector<8x64xf32>
    %119 = arith.truncf %118 : vector<8x64xf32> to vector<8x64xbf16>
    %120 = vector.extract_strided_slice %5 {offsets = [32, 0], sizes = [8, 256], strides = [1, 1]} : vector<72x256xf32> to vector<8x256xf32>
    %cst_19 = arith.constant dense<0.000000e+00> : vector<8x256xf32>
    %121 = tpu.matmul %119, %6, %cst_19 {dimension_numbers = #tpu.dot_dimension_numbers<[1], [0], [0], [1], [0, 0, 1, 1], [], []>} : vector<8x64xbf16>, vector<64x256xbf16>, vector<8x256xf32> -> vector<8x256xf32>
    %122 = arith.addf %120, %121 : vector<8x256xf32>
    %123 = arith.negf %122 : vector<8x256xf32>
    %124 = math.exp %123 : vector<8x256xf32>
    %cst_20 = arith.constant 1.000000e+00 : f32
    %125 = vector.broadcast %cst_20 : f32 to vector<8x256xf32>
    %126 = arith.addf %125, %124 : vector<8x256xf32>
    %127 = arith.divf %125, %126 : vector<8x256xf32>
    %128 = math.tanh %122 : vector<8x256xf32>
    %129 = vector.extract_strided_slice %127 {offsets = [0, 128], sizes = [8, 32], strides = [1, 1]} : vector<8x256xf32> to vector<8x32xf32>
    %130 = vector.extract_strided_slice %127 {offsets = [0, 160], sizes = [8, 32], strides = [1, 1]} : vector<8x256xf32> to vector<8x32xf32>
    %131 = vector.extract_strided_slice %128 {offsets = [0, 192], sizes = [8, 32], strides = [1, 1]} : vector<8x256xf32> to vector<8x32xf32>
    %132 = vector.extract_strided_slice %127 {offsets = [0, 224], sizes = [8, 32], strides = [1, 1]} : vector<8x256xf32> to vector<8x32xf32>
    %133 = arith.mulf %130, %106 : vector<8x32xf32>
    %134 = arith.mulf %129, %131 : vector<8x32xf32>
    %135 = arith.addf %133, %134 : vector<8x32xf32>
    %136 = math.tanh %135 : vector<8x32xf32>
    %137 = arith.mulf %132, %136 : vector<8x32xf32>
    %138 = vector.extract_strided_slice %127 {offsets = [0, 0], sizes = [8, 32], strides = [1, 1]} : vector<8x256xf32> to vector<8x32xf32>
    %139 = vector.extract_strided_slice %127 {offsets = [0, 32], sizes = [8, 32], strides = [1, 1]} : vector<8x256xf32> to vector<8x32xf32>
    %140 = vector.extract_strided_slice %128 {offsets = [0, 64], sizes = [8, 32], strides = [1, 1]} : vector<8x256xf32> to vector<8x32xf32>
    %141 = vector.extract_strided_slice %127 {offsets = [0, 96], sizes = [8, 32], strides = [1, 1]} : vector<8x256xf32> to vector<8x32xf32>
    %142 = arith.mulf %139, %115 : vector<8x32xf32>
    %143 = arith.mulf %138, %140 : vector<8x32xf32>
    %144 = arith.addf %142, %143 : vector<8x32xf32>
    %145 = math.tanh %144 : vector<8x32xf32>
    %146 = arith.mulf %141, %145 : vector<8x32xf32>
    %147 = tpu.concatenate %146, %137 in 1 : vector<8x32xf32>, vector<8x32xf32> -> vector<8x64xf32>
    %148 = arith.truncf %147 : vector<8x64xf32> to vector<8x64xbf16>
    %149 = vector.extract_strided_slice %5 {offsets = [40, 0], sizes = [8, 256], strides = [1, 1]} : vector<72x256xf32> to vector<8x256xf32>
    %cst_21 = arith.constant dense<0.000000e+00> : vector<8x256xf32>
    %150 = tpu.matmul %148, %6, %cst_21 {dimension_numbers = #tpu.dot_dimension_numbers<[1], [0], [0], [1], [0, 0, 1, 1], [], []>} : vector<8x64xbf16>, vector<64x256xbf16>, vector<8x256xf32> -> vector<8x256xf32>
    %151 = arith.addf %149, %150 : vector<8x256xf32>
    %152 = arith.negf %151 : vector<8x256xf32>
    %153 = math.exp %152 : vector<8x256xf32>
    %cst_22 = arith.constant 1.000000e+00 : f32
    %154 = vector.broadcast %cst_22 : f32 to vector<8x256xf32>
    %155 = arith.addf %154, %153 : vector<8x256xf32>
    %156 = arith.divf %154, %155 : vector<8x256xf32>
    %157 = math.tanh %151 : vector<8x256xf32>
    %158 = vector.extract_strided_slice %156 {offsets = [0, 128], sizes = [8, 32], strides = [1, 1]} : vector<8x256xf32> to vector<8x32xf32>
    %159 = vector.extract_strided_slice %156 {offsets = [0, 160], sizes = [8, 32], strides = [1, 1]} : vector<8x256xf32> to vector<8x32xf32>
    %160 = vector.extract_strided_slice %157 {offsets = [0, 192], sizes = [8, 32], strides = [1, 1]} : vector<8x256xf32> to vector<8x32xf32>
    %161 = vector.extract_strided_slice %156 {offsets = [0, 224], sizes = [8, 32], strides = [1, 1]} : vector<8x256xf32> to vector<8x32xf32>
    %162 = arith.mulf %159, %135 : vector<8x32xf32>
    %163 = arith.mulf %158, %160 : vector<8x32xf32>
    %164 = arith.addf %162, %163 : vector<8x32xf32>
    %165 = math.tanh %164 : vector<8x32xf32>
    %166 = arith.mulf %161, %165 : vector<8x32xf32>
    %167 = vector.extract_strided_slice %156 {offsets = [0, 0], sizes = [8, 32], strides = [1, 1]} : vector<8x256xf32> to vector<8x32xf32>
    %168 = vector.extract_strided_slice %156 {offsets = [0, 32], sizes = [8, 32], strides = [1, 1]} : vector<8x256xf32> to vector<8x32xf32>
    %169 = vector.extract_strided_slice %157 {offsets = [0, 64], sizes = [8, 32], strides = [1, 1]} : vector<8x256xf32> to vector<8x32xf32>
    %170 = vector.extract_strided_slice %156 {offsets = [0, 96], sizes = [8, 32], strides = [1, 1]} : vector<8x256xf32> to vector<8x32xf32>
    %171 = arith.mulf %168, %144 : vector<8x32xf32>
    %172 = arith.mulf %167, %169 : vector<8x32xf32>
    %173 = arith.addf %171, %172 : vector<8x32xf32>
    %174 = math.tanh %173 : vector<8x32xf32>
    %175 = arith.mulf %170, %174 : vector<8x32xf32>
    %176 = tpu.concatenate %175, %166 in 1 : vector<8x32xf32>, vector<8x32xf32> -> vector<8x64xf32>
    %177 = arith.truncf %176 : vector<8x64xf32> to vector<8x64xbf16>
    %178 = vector.extract_strided_slice %5 {offsets = [48, 0], sizes = [8, 256], strides = [1, 1]} : vector<72x256xf32> to vector<8x256xf32>
    %cst_23 = arith.constant dense<0.000000e+00> : vector<8x256xf32>
    %179 = tpu.matmul %177, %6, %cst_23 {dimension_numbers = #tpu.dot_dimension_numbers<[1], [0], [0], [1], [0, 0, 1, 1], [], []>} : vector<8x64xbf16>, vector<64x256xbf16>, vector<8x256xf32> -> vector<8x256xf32>
    %180 = arith.addf %178, %179 : vector<8x256xf32>
    %181 = arith.negf %180 : vector<8x256xf32>
    %182 = math.exp %181 : vector<8x256xf32>
    %cst_24 = arith.constant 1.000000e+00 : f32
    %183 = vector.broadcast %cst_24 : f32 to vector<8x256xf32>
    %184 = arith.addf %183, %182 : vector<8x256xf32>
    %185 = arith.divf %183, %184 : vector<8x256xf32>
    %186 = math.tanh %180 : vector<8x256xf32>
    %187 = vector.extract_strided_slice %185 {offsets = [0, 128], sizes = [8, 32], strides = [1, 1]} : vector<8x256xf32> to vector<8x32xf32>
    %188 = vector.extract_strided_slice %185 {offsets = [0, 160], sizes = [8, 32], strides = [1, 1]} : vector<8x256xf32> to vector<8x32xf32>
    %189 = vector.extract_strided_slice %186 {offsets = [0, 192], sizes = [8, 32], strides = [1, 1]} : vector<8x256xf32> to vector<8x32xf32>
    %190 = vector.extract_strided_slice %185 {offsets = [0, 224], sizes = [8, 32], strides = [1, 1]} : vector<8x256xf32> to vector<8x32xf32>
    %191 = arith.mulf %188, %164 : vector<8x32xf32>
    %192 = arith.mulf %187, %189 : vector<8x32xf32>
    %193 = arith.addf %191, %192 : vector<8x32xf32>
    %194 = math.tanh %193 : vector<8x32xf32>
    %195 = arith.mulf %190, %194 : vector<8x32xf32>
    %196 = vector.extract_strided_slice %185 {offsets = [0, 0], sizes = [8, 32], strides = [1, 1]} : vector<8x256xf32> to vector<8x32xf32>
    %197 = vector.extract_strided_slice %185 {offsets = [0, 32], sizes = [8, 32], strides = [1, 1]} : vector<8x256xf32> to vector<8x32xf32>
    %198 = vector.extract_strided_slice %186 {offsets = [0, 64], sizes = [8, 32], strides = [1, 1]} : vector<8x256xf32> to vector<8x32xf32>
    %199 = vector.extract_strided_slice %185 {offsets = [0, 96], sizes = [8, 32], strides = [1, 1]} : vector<8x256xf32> to vector<8x32xf32>
    %200 = arith.mulf %197, %173 : vector<8x32xf32>
    %201 = arith.mulf %196, %198 : vector<8x32xf32>
    %202 = arith.addf %200, %201 : vector<8x32xf32>
    %203 = math.tanh %202 : vector<8x32xf32>
    %204 = arith.mulf %199, %203 : vector<8x32xf32>
    %205 = tpu.concatenate %204, %195 in 1 : vector<8x32xf32>, vector<8x32xf32> -> vector<8x64xf32>
    %206 = arith.truncf %205 : vector<8x64xf32> to vector<8x64xbf16>
    %207 = vector.extract_strided_slice %5 {offsets = [56, 0], sizes = [8, 256], strides = [1, 1]} : vector<72x256xf32> to vector<8x256xf32>
    %cst_25 = arith.constant dense<0.000000e+00> : vector<8x256xf32>
    %208 = tpu.matmul %206, %6, %cst_25 {dimension_numbers = #tpu.dot_dimension_numbers<[1], [0], [0], [1], [0, 0, 1, 1], [], []>} : vector<8x64xbf16>, vector<64x256xbf16>, vector<8x256xf32> -> vector<8x256xf32>
    %209 = arith.addf %207, %208 : vector<8x256xf32>
    %210 = arith.negf %209 : vector<8x256xf32>
    %211 = math.exp %210 : vector<8x256xf32>
    %cst_26 = arith.constant 1.000000e+00 : f32
    %212 = vector.broadcast %cst_26 : f32 to vector<8x256xf32>
    %213 = arith.addf %212, %211 : vector<8x256xf32>
    %214 = arith.divf %212, %213 : vector<8x256xf32>
    %215 = math.tanh %209 : vector<8x256xf32>
    %216 = vector.extract_strided_slice %214 {offsets = [0, 128], sizes = [8, 32], strides = [1, 1]} : vector<8x256xf32> to vector<8x32xf32>
    %217 = vector.extract_strided_slice %214 {offsets = [0, 160], sizes = [8, 32], strides = [1, 1]} : vector<8x256xf32> to vector<8x32xf32>
    %218 = vector.extract_strided_slice %215 {offsets = [0, 192], sizes = [8, 32], strides = [1, 1]} : vector<8x256xf32> to vector<8x32xf32>
    %219 = vector.extract_strided_slice %214 {offsets = [0, 224], sizes = [8, 32], strides = [1, 1]} : vector<8x256xf32> to vector<8x32xf32>
    %220 = arith.mulf %217, %193 : vector<8x32xf32>
    %221 = arith.mulf %216, %218 : vector<8x32xf32>
    %222 = arith.addf %220, %221 : vector<8x32xf32>
    %223 = math.tanh %222 : vector<8x32xf32>
    %224 = arith.mulf %219, %223 : vector<8x32xf32>
    %225 = vector.extract_strided_slice %214 {offsets = [0, 0], sizes = [8, 32], strides = [1, 1]} : vector<8x256xf32> to vector<8x32xf32>
    %226 = vector.extract_strided_slice %214 {offsets = [0, 32], sizes = [8, 32], strides = [1, 1]} : vector<8x256xf32> to vector<8x32xf32>
    %227 = vector.extract_strided_slice %215 {offsets = [0, 64], sizes = [8, 32], strides = [1, 1]} : vector<8x256xf32> to vector<8x32xf32>
    %228 = vector.extract_strided_slice %214 {offsets = [0, 96], sizes = [8, 32], strides = [1, 1]} : vector<8x256xf32> to vector<8x32xf32>
    %229 = arith.mulf %226, %202 : vector<8x32xf32>
    %230 = arith.mulf %225, %227 : vector<8x32xf32>
    %231 = arith.addf %229, %230 : vector<8x32xf32>
    %232 = math.tanh %231 : vector<8x32xf32>
    %233 = arith.mulf %228, %232 : vector<8x32xf32>
    %234 = tpu.concatenate %233, %224 in 1 : vector<8x32xf32>, vector<8x32xf32> -> vector<8x64xf32>
    %235 = arith.truncf %234 : vector<8x64xf32> to vector<8x64xbf16>
    %236 = vector.extract_strided_slice %5 {offsets = [64, 0], sizes = [8, 256], strides = [1, 1]} : vector<72x256xf32> to vector<8x256xf32>
    %cst_27 = arith.constant dense<0.000000e+00> : vector<8x256xf32>
    %237 = tpu.matmul %235, %6, %cst_27 {dimension_numbers = #tpu.dot_dimension_numbers<[1], [0], [0], [1], [0, 0, 1, 1], [], []>} : vector<8x64xbf16>, vector<64x256xbf16>, vector<8x256xf32> -> vector<8x256xf32>
    %238 = arith.addf %236, %237 : vector<8x256xf32>
    %239 = arith.negf %238 : vector<8x256xf32>
    %240 = math.exp %239 : vector<8x256xf32>
    %cst_28 = arith.constant 1.000000e+00 : f32
    %241 = vector.broadcast %cst_28 : f32 to vector<8x256xf32>
    %242 = arith.addf %241, %240 : vector<8x256xf32>
    %243 = arith.divf %241, %242 : vector<8x256xf32>
    %244 = math.tanh %238 : vector<8x256xf32>
    %245 = vector.extract_strided_slice %243 {offsets = [0, 128], sizes = [8, 32], strides = [1, 1]} : vector<8x256xf32> to vector<8x32xf32>
    %246 = vector.extract_strided_slice %243 {offsets = [0, 160], sizes = [8, 32], strides = [1, 1]} : vector<8x256xf32> to vector<8x32xf32>
    %247 = vector.extract_strided_slice %244 {offsets = [0, 192], sizes = [8, 32], strides = [1, 1]} : vector<8x256xf32> to vector<8x32xf32>
    %248 = vector.extract_strided_slice %243 {offsets = [0, 224], sizes = [8, 32], strides = [1, 1]} : vector<8x256xf32> to vector<8x32xf32>
    %249 = arith.mulf %246, %222 : vector<8x32xf32>
    %250 = arith.mulf %245, %247 : vector<8x32xf32>
    %251 = arith.addf %249, %250 : vector<8x32xf32>
    %252 = math.tanh %251 : vector<8x32xf32>
    %253 = arith.mulf %248, %252 : vector<8x32xf32>
    %254 = math.tanh %224 : vector<8x32xf32>
    %255 = math.tanh %253 : vector<8x32xf32>
    %c0_29 = arith.constant 0 : index
    %c0_30 = arith.constant 0 : index
    %256 = vector.load %arg4[%c0_29, %c0_30] : memref<32x32xf32, #tpu.memory_space<vmem>>, vector<32x32xf32>
    %cst_31 = arith.constant dense<0.000000e+00> : vector<8x32xf32>
    %257 = tpu.matmul %254, %256, %cst_31 {dimension_numbers = #tpu.dot_dimension_numbers<[1], [0], [0], [1], [0, 0, 1, 1], [], []>} : vector<8x32xf32>, vector<32x32xf32>, vector<8x32xf32> -> vector<8x32xf32>
    %c0_32 = arith.constant 0 : index
    %c0_33 = arith.constant 0 : index
    %258 = vector.load %arg5[%c0_32, %c0_33] : memref<32x32xf32, #tpu.memory_space<vmem>>, vector<32x32xf32>
    %cst_34 = arith.constant dense<0.000000e+00> : vector<8x32xf32>
    %259 = tpu.matmul %255, %258, %cst_34 {dimension_numbers = #tpu.dot_dimension_numbers<[1], [0], [0], [1], [0, 0, 1, 1], [], []>} : vector<8x32xf32>, vector<32x32xf32>, vector<8x32xf32> -> vector<8x32xf32>
    %260 = arith.addf %257, %259 : vector<8x32xf32>
    %c0_35 = arith.constant 0 : index
    %c0_36 = arith.constant 0 : index
    %261 = vector.load %arg6[%c0_35, %c0_36] : memref<1x32xf32, #tpu.memory_space<vmem>>, vector<1x32xf32>
    %262 = vector.broadcast %261 : vector<1x32xf32> to vector<8x32xf32>
    %263 = arith.addf %260, %262 : vector<8x32xf32>
    %264 = math.tanh %263 : vector<8x32xf32>
    %c0_37 = arith.constant 0 : index
    %c0_38 = arith.constant 0 : index
    %265 = vector.load %arg7[%c0_37, %c0_38] : memref<32x128xf32, #tpu.memory_space<vmem>>, vector<32x128xf32>
    %cst_39 = arith.constant dense<0.000000e+00> : vector<8x128xf32>
    %266 = tpu.matmul %264, %265, %cst_39 {dimension_numbers = #tpu.dot_dimension_numbers<[1], [0], [0], [1], [0, 0, 1, 1], [], []>} : vector<8x32xf32>, vector<32x128xf32>, vector<8x128xf32> -> vector<8x128xf32>
    %c0_40 = arith.constant 0 : index
    %c0_41 = arith.constant 0 : index
    %267 = vector.load %arg8[%c0_40, %c0_41] : memref<1x128xf32, #tpu.memory_space<vmem>>, vector<1x128xf32>
    %268 = vector.broadcast %267 : vector<1x128xf32> to vector<8x128xf32>
    %269 = arith.addf %266, %268 : vector<8x128xf32>
    %c0_42 = arith.constant 0 : index
    %c0_43 = arith.constant 0 : index
    %270 = vector.load %arg9[%c0_42, %c0_43] : memref<8x128xf32, #tpu.memory_space<vmem>>, vector<8x128xf32>
    tpu.vector_store %arg9[%c0_42, %c0_43], %269 {strides = array<i32>} : memref<8x128xf32, #tpu.memory_space<vmem>>, vector<8x128xf32>,
    return
  }
}

</mosaic_0001>

<llo_original>
// kernel: lstmnet_forward.1
$region0: #{lstmnet_forward.1}
  #allocation0 [shape = 'u32[]', space=smem, size = 0x4, offset = 0x4, fixed_abs, tag = 'smem constant byte address 0x4 - core index']
  #allocation1 [shape = 'u32[144,128]{1,0:T(1,128)}', space=vmem, size = 0x12000, scoped, tag = 'internal scratch']
  %s0 = inlined_call_operand.vmem [shape: f32[72,16], index: 0, kind: input, shape index: {}]
  %s1 = inlined_call_operand.vmem [shape: f32[16,256], index: 1, kind: input, shape index: {}]
  %s2 = inlined_call_operand.vmem [shape: f32[1,256], index: 2, kind: input, shape index: {}]
  %s3 = inlined_call_operand.vmem [shape: bf16[64,256], index: 3, kind: input, shape index: {}]
  %s4 = inlined_call_operand.vmem [shape: f32[32,32], index: 4, kind: input, shape index: {}]
  %s5 = inlined_call_operand.vmem [shape: f32[32,32], index: 5, kind: input, shape index: {}]
  %s6 = inlined_call_operand.vmem [shape: f32[1,32], index: 6, kind: input, shape index: {}]
  %s7 = inlined_call_operand.vmem [shape: f32[32,128], index: 7, kind: input, shape index: {}]
  %s8 = inlined_call_operand.vmem [shape: f32[1,128], index: 8, kind: input, shape index: {}]
  %s9 = inlined_call_operand.vmem [shape: f32[8,128], index: 9, kind: output, shape index: {}]
  %s10 = sld [smem:[#allocation0]]
  $region46: #{lstmnet_forward.1} parent=0
    _
  %s12 = ssub.s32 1, %s10
  %s13 = scalar_select 0, %s12, %s10
  // Predicated region
  $region2: #{lstmnet_forward.1} parent=0 // pred_check
    _
  $region3: #{lstmnet_forward.1} parent=0 // pred_check_branch
    %15 = sbr.rel (0) target = $region5
  $region4: #{lstmnet_forward.1} parent=0 // pred_region
    _
  $region5: #{lstmnet_forward.1} parent=0 // pred_fallthru
    _
  // Predicated region
  $region6: #{lstmnet_forward.1} parent=0 // pred_check
    _
  $region7: #{lstmnet_forward.1} parent=0 // pred_check_branch
    %17 = sbr.rel (0) target = $region9
  $region8: #{lstmnet_forward.1} parent=0 // pred_region
    _
  $region9: #{lstmnet_forward.1} parent=0 // pred_fallthru
    _
  // Predicated region
  $region10: #{lstmnet_forward.1} parent=0 // pred_check
    _
  $region11: #{lstmnet_forward.1} parent=0 // pred_check_branch
    %19 = sbr.rel (0) target = $region13
  $region12: #{lstmnet_forward.1} parent=0 // pred_region
    _
  $region13: #{lstmnet_forward.1} parent=0 // pred_fallthru
    _
  // Predicated region
  $region14: #{lstmnet_forward.1} parent=0 // pred_check
    _
  $region15: #{lstmnet_forward.1} parent=0 // pred_check_branch
    %21 = sbr.rel (0) target = $region17
  $region16: #{lstmnet_forward.1} parent=0 // pred_region
    _
  $region17: #{lstmnet_forward.1} parent=0 // pred_fallthru
    _
  // Predicated region
  $region18: #{lstmnet_forward.1} parent=0 // pred_check
    _
  $region19: #{lstmnet_forward.1} parent=0 // pred_check_branch
    %23 = sbr.rel (0) target = $region21
  $region20: #{lstmnet_forward.1} parent=0 // pred_region
    _
  $region21: #{lstmnet_forward.1} parent=0 // pred_fallthru
    _
  // Predicated region
  $region22: #{lstmnet_forward.1} parent=0 // pred_check
    _
  $region23: #{lstmnet_forward.1} parent=0 // pred_check_branch
    %25 = sbr.rel (0) target = $region25
  $region24: #{lstmnet_forward.1} parent=0 // pred_region
    _
  $region25: #{lstmnet_forward.1} parent=0 // pred_fallthru
    _
  // Predicated region
  $region26: #{lstmnet_forward.1} parent=0 // pred_check
    _
  $region27: #{lstmnet_forward.1} parent=0 // pred_check_branch
    %27 = sbr.rel (0) target = $region29
  $region28: #{lstmnet_forward.1} parent=0 // pred_region
    _
  $region29: #{lstmnet_forward.1} parent=0 // pred_fallthru
    _
  // Predicated region
  $region30: #{lstmnet_forward.1} parent=0 // pred_check
    _
  $region31: #{lstmnet_forward.1} parent=0 // pred_check_branch
    %29 = sbr.rel (0) target = $region33
  $region32: #{lstmnet_forward.1} parent=0 // pred_region
    _
  $region33: #{lstmnet_forward.1} parent=0 // pred_fallthru
    _
  // Predicated region
  $region34: #{lstmnet_forward.1} parent=0 // pred_check
    _
  $region35: #{lstmnet_forward.1} parent=0 // pred_check_branch
    %31 = sbr.rel (0) target = $region37
  $region36: #{lstmnet_forward.1} parent=0 // pred_region
    _
  $region37: #{lstmnet_forward.1} parent=0 // pred_fallthru
    _
  %v33 = vld [vmem:[%s0] sm:$0xff]
  %v34 = vld [vmem:[%s0 + $0x8] sm:$0xff]
  %v35 = vld [vmem:[%s0 + $0x10] sm:$0xff]
  %v36 = vld [vmem:[%s0 + $0x18] sm:$0xff]
  %v37 = vld [vmem:[%s0 + $0x20] sm:$0xff]
  %v38 = vld [vmem:[%s0 + $0x28] sm:$0xff]
  %v39 = vld [vmem:[%s0 + $0x30] sm:$0xff]
  %v40 = vld [vmem:[%s0 + $0x38] sm:$0xff]
  %v41 = vld [vmem:[%s0 + $0x40] sm:$0xff]
  %v42 = vld [vmem:[%s1] sm:$0xff]
  %v43 = vld [vmem:[%s1 + $0x8] sm:$0xff]
  %v44 = vld [vmem:[%s1 + $0x10] sm:$0xff]
  %v45 = vld [vmem:[%s1 + $0x18] sm:$0xff]
  %v46 = vld [vmem:[%s2] sm:$0x3]
  %v48 = vlaneseq
  %v49 = vshrl.u32 %v48, 7
  %v50 = vsub.s32 0, %v49
  %v51 = vrot.slane %v46, %v50
  %v52 = vlaneseq
  %v53 = vshrl.u32 %v52, 7
  %v54 = vsub.s32 1, %v53
  %v55 = vrot.slane %v46, %v54
  %vm58 = vcmask 130048
  %v60 = vsel %vm58, %v33, 0
  %v63 = vsel %vm58, %v34, 0
  %v66 = vsel %vm58, %v35, 0
  %v69 = vsel %vm58, %v36, 0
  %v72 = vsel %vm58, %v37, 0
  %v75 = vsel %vm58, %v38, 0
  %v78 = vsel %vm58, %v39, 0
  %v81 = vsel %vm58, %v40, 0
  %v84 = vsel %vm58, %v41, 0
  %86 = vmatprep.subr.mxu0 %v43
  %87 = vmatpush1.msra.mxu0 %v42
  %88 = vmatprep.subr.mxu0 %v45
  %89 = vmatpush1.msra.mxu0 %v44
  %90 = vmatprep.subr.mxu0 0.0
  %91 = vmatpush1.msra.mxu0 0.0
  %92 = vmatprep.subr.mxu0 0.0
  %93 = vmatpush1.msra.mxu0 0.0
  %94 = vmatprep.subr.mxu0 0.0
  %95 = vmatpush1.msra.mxu0 0.0
  %96 = vmatprep.subr.mxu0 0.0
  %97 = vmatpush1.msra.mxu0 0.0
  %98 = vmatprep.subr.mxu0 0.0
  %99 = vmatpush1.msra.mxu0 0.0
  %100 = vmatprep.subr.mxu0 0.0
  %101 = vmatpush1.msra.mxu0 0.0
  %102 = vmatprep.subr.mxu0 0.0
  %103 = vmatpush1.msra.mxu0 0.0
  %104 = vmatprep.subr.mxu0 0.0
  %105 = vmatpush1.msra.mxu0 0.0
  %106 = vmatprep.subr.mxu0 0.0
  %107 = vmatpush1.msra.mxu0 0.0
  %108 = vmatprep.subr.mxu0 0.0
  %109 = vmatpush1.msra.mxu0 0.0
  %110 = vmatprep.subr.mxu0 0.0
  %111 = vmatpush1.msra.mxu0 0.0
  %112 = vmatprep.subr.mxu0 0.0
  %113 = vmatpush1.msra.mxu0 0.0
  %114 = vmatprep.subr.mxu0 0.0
  %115 = vmatpush1.msra.mxu0 0.0
  %116 = vmatprep.subr.mxu0 0.0
  %117 = vmatpush1.msra.mxu0 0.0
  %118 = vmatprep.subr.mxu0 0.0
  %119 = vmatpush1.msra.mxu0 0.0
  %120 = vmatprep.subr.mxu0 0.0
  %121 = vmatpush1.msra.mxu0 0.0
  %122 = vmatprep.subr.mxu0 0.0
  %123 = vmatpush1.msra.mxu0 0.0
  %124 = vmatprep.subr.mxu0 0.0
  %125 = vmatpush1.msra.mxu0 0.0
  %126 = vmatprep.subr.mxu0 0.0
  %127 = vmatpush1.msra.mxu0 0.0
  %128 = vmatprep.subr.mxu0 0.0
  %129 = vmatpush1.msra.mxu0 0.0
  %130 = vmatprep.subr.mxu0 0.0
  %131 = vmatpush1.msra.mxu0 0.0
  %132 = vmatprep.subr.mxu0 0.0
  %133 = vmatpush1.msra.mxu0 0.0
  %134 = vmatprep.subr.mxu0 0.0
  %135 = vmatpush1.msra.mxu0 0.0
  %136 = vmatprep.subr.mxu0 0.0
  %137 = vmatpush1.msra.mxu0 0.0
  %138 = vmatprep.subr.mxu0 0.0
  %139 = vmatpush1.msra.mxu0 0.0
  %140 = vmatprep.subr.mxu0 0.0
  %141 = vmatpush1.msra.mxu0 0.0
  %142 = vmatprep.subr.mxu0 0.0
  %143 = vmatpush1.msra.mxu0 0.0
  %144 = vmatprep.subr.mxu0 0.0
  %145 = vmatpush1.msra.mxu0 0.0
  %146 = vmatprep.subr.mxu0 0.0
  %147 = vmatpush1.msra.mxu0 0.0
  %148 = vmatprep.subr.mxu0 0.0
  %149 = vmatpush1.msra.mxu0 0.0
  %150 = vmatprep.mubr.f32.mxu0 0.0
  %151 = vmatmul.mubr.f32.gmra.mrb[0].mxu0 %v60
  %v152 = vpop.f32.mrb[0].mxu0
  %v153 = vadd.f32 %v51, %v152
  %v154 = vpop.f32.mrb[0].mxu0
  %155 = vmatprep.mubr.f32.mxu0 0.0
  %156 = vmatmul.mubr.f32.gmra.mrb[0].mxu0 %v63
  %v157 = vpop.f32.mrb[0].mxu0
  %v158 = vadd.f32 %v51, %v157
  %v159 = vpop.f32.mrb[0].mxu0
  %v160 = vadd.f32 %v55, %v159
  %161 = vmatprep.mubr.f32.mxu0 0.0
  %162 = vmatmul.mubr.f32.gmra.mrb[0].mxu0 %v66
  %v163 = vpop.f32.mrb[0].mxu0
  %v164 = vadd.f32 %v51, %v163
  %v165 = vpop.f32.mrb[0].mxu0
  %v166 = vadd.f32 %v55, %v165
  %167 = vmatprep.mubr.f32.mxu0 0.0
  %168 = vmatmul.mubr.f32.gmra.mrb[0].mxu0 %v69
  %v169 = vpop.f32.mrb[0].mxu0
  %v170 = vadd.f32 %v51, %v169
  %v171 = vpop.f32.mrb[0].mxu0
  %v172 = vadd.f32 %v55, %v171
  %173 = vmatprep.mubr.f32.mxu0 0.0
  %174 = vmatmul.mubr.f32.gmra.mrb[0].mxu0 %v72
  %v175 = vpop.f32.mrb[0].mxu0
  %v176 = vadd.f32 %v51, %v175
  %v177 = vpop.f32.mrb[0].mxu0
  %v178 = vadd.f32 %v55, %v177
  %179 = vmatprep.mubr.f32.mxu0 0.0
  %180 = vmatmul.mubr.f32.gmra.mrb[0].mxu0 %v75
  %v181 = vpop.f32.mrb[0].mxu0
  %v182 = vadd.f32 %v51, %v181
  %v183 = vpop.f32.mrb[0].mxu0
  %v184 = vadd.f32 %v55, %v183
  %185 = vmatprep.mubr.f32.mxu0 0.0
  %186 = vmatmul.mubr.f32.gmra.mrb[0].mxu0 %v78
  %v187 = vpop.f32.mrb[0].mxu0
  %v188 = vadd.f32 %v51, %v187
  %v189 = vpop.f32.mrb[0].mxu0
  %v190 = vadd.f32 %v55, %v189
  %191 = vmatprep.mubr.f32.mxu0 0.0
  %192 = vmatmul.mubr.f32.gmra.mrb[0].mxu0 %v81
  %v193 = vpop.f32.mrb[0].mxu0
  %v194 = vadd.f32 %v51, %v193
  %v195 = vpop.f32.mrb[0].mxu0
  %v196 = vadd.f32 %v55, %v195
  %197 = vmatprep.mubr.f32.mxu0 0.0
  %198 = vmatmul.mubr.f32.gmra.mrb[0].mxu0 %v84
  %v199 = vpop.f32.mrb[0].mxu0
  %v200 = vpop.f32.mrb[0].mxu0
  %v201 = vadd.f32 %v55, %v200
  %202 = vdwg.mxu0
  %v203 = vld [vmem:[%s3] sm:$0xff]
  %v204 = vld [vmem:[%s3 + $0x8] sm:$0xff]
  %v205 = vld [vmem:[%s3 + $0x10] sm:$0xff]
  %v206 = vld [vmem:[%s3 + $0x18] sm:$0xff]
  %v207 = vld [vmem:[%s3 + $0x20] sm:$0xff]
  %v208 = vld [vmem:[%s3 + $0x28] sm:$0xff]
  %v209 = vld [vmem:[%s3 + $0x30] sm:$0xff]
  %v210 = vld [vmem:[%s3 + $0x38] sm:$0xff]
  %v211 = vpack.c.bf16 0.0, 0.0
  %v220 = vunpack.c.l.b16 %v203
  %v221 = vunpack.c.h.b16 %v203
  %v222 = vunpack.c.l.b16 %v204
  %v223 = vunpack.c.h.b16 %v204
  %v224 = vunpack.c.l.b16 %v205
  %v225 = vunpack.c.h.b16 %v205
  %v226 = vunpack.c.l.b16 %v206
  %v227 = vunpack.c.h.b16 %v206
  %v228 = vunpack.c.l.b16 %v207
  %v229 = vunpack.c.h.b16 %v207
  %v230 = vunpack.c.l.b16 %v208
  %v231 = vunpack.c.h.b16 %v208
  %v232 = vunpack.c.l.b16 %v209
  %v233 = vunpack.c.h.b16 %v209
  %v234 = vunpack.c.l.b16 %v210
  %v235 = vunpack.c.h.b16 %v210
  %v236 = vpack.c.b16 %v222, %v220
  %v237 = vpack.c.b16 %v223, %v221
  %v238 = vpack.c.b16 %v226, %v224
  %v239 = vpack.c.b16 %v227, %v225
  %v240 = vpack.c.b16 %v230, %v228
  %v241 = vpack.c.b16 %v231, %v229
  %v242 = vpack.c.b16 %v234, %v232
  %v243 = vpack.c.b16 %v235, %v233
  %vm252 = vcmask 523264
  %v254 = vsel %vm252, %v211, 0
  %256 = vmatprep.subr.bf16.mxu0 %v237
  %257 = vmatpush1.bf16.msra.mxu0 %v236
  %258 = vmatprep.subr.bf16.mxu0 %v239
  %259 = vmatpush1.bf16.msra.mxu0 %v238
  %260 = vmatprep.subr.bf16.mxu0 %v241
  %261 = vmatpush1.bf16.msra.mxu0 %v240
  %262 = vmatprep.subr.bf16.mxu0 %v243
  %263 = vmatpush1.bf16.msra.mxu0 %v242
  %264 = vmatprep.subr.bf16.mxu0 0
  %265 = vmatpush1.bf16.msra.mxu0 0
  %266 = vmatprep.subr.bf16.mxu0 0
  %267 = vmatpush1.bf16.msra.mxu0 0
  %268 = vmatprep.subr.bf16.mxu0 0
  %269 = vmatpush1.bf16.msra.mxu0 0
  %270 = vmatprep.subr.bf16.mxu0 0
  %271 = vmatpush1.bf16.msra.mxu0 0
  %272 = vmatprep.subr.bf16.mxu0 0
  %273 = vmatpush1.bf16.msra.mxu0 0
  %274 = vmatprep.subr.bf16.mxu0 0
  %275 = vmatpush1.bf16.msra.mxu0 0
  %276 = vmatprep.subr.bf16.mxu0 0
  %277 = vmatpush1.bf16.msra.mxu0 0
  %278 = vmatprep.subr.bf16.mxu0 0
  %279 = vmatpush1.bf16.msra.mxu0 0
  %280 = vmatprep.subr.bf16.mxu0 0
  %281 = vmatpush1.bf16.msra.mxu0 0
  %282 = vmatprep.subr.bf16.mxu0 0
  %283 = vmatpush1.bf16.msra.mxu0 0
  %284 = vmatprep.subr.bf16.mxu0 0
  %285 = vmatpush1.bf16.msra.mxu0 0
  %286 = vmatprep.subr.bf16.mxu0 0
  %287 = vmatpush1.bf16.msra.mxu0 0
  %288 = vmatprep.mubr.bf16.mxu0 0
  %289 = vmatmul.mubr.bf16.gmra.mrb[0].mxu0 %v254
  %v290 = vpop.f32.mrb[0].mxu0
  %v291 = vadd.f32 0.0, %v290
  %v292 = vpop.f32.mrb[0].mxu0
  %v293 = vpop.f32.mrb[0].mxu0
  %v294 = vpop.f32.mrb[0].mxu0
  %295 = vdwg.mxu0
  %v296 = vadd.f32 %v153, %v291
  %v297 = vxor.u32 %v296, 2147483648
  %v298 = vmul.f32 %v297, 1.442695
  %v299 = vpow.pop %v298
  %v300 = vadd.f32 %v299, 1.0
  %v301 = vrcp.pop %v300
  %v302 = vmul.f32 1.0, %v301
  %v303 = vtanh.pop %v296
  %v304 = vmul.f32 %v302, 0.0
  %306 = vrot.lane.b32.xlu0 %v303, 64
  %v307 = vpop.permute.xlu0 %306
  %v309 = vmul.f32 %v302, %v307
  %311 = vrot.lane.b32.xlu0 %v309, 32
  %v312 = vpop.permute.xlu0 %311
  %v314 = vadd.f32 %v304, %v312
  %v315 = vtanh.pop %v314
  %317 = vrot.lane.b32.xlu0 %v315, 64
  %v318 = vpop.permute.xlu0 %317
  %v320 = vmul.f32 %v302, %v318
  %322 = vrot.lane.b32.xlu0 %v320, 32
  %v323 = vpop.permute.xlu0 %322
  %vm325 = vcmask 261120
  %v326 = vsel %vm325, %v323, 0.0
  %v327 = vpack.c.bf16 %v326, %v326
  %v329 = vsel %vm252, %v327, 0
  %331 = vmatprep.subr.bf16.mxu0 %v237
  %332 = vmatpush1.bf16.msra.mxu0 %v236
  %333 = vmatprep.subr.bf16.mxu0 %v239
  %334 = vmatpush1.bf16.msra.mxu0 %v238
  %335 = vmatprep.subr.bf16.mxu0 %v241
  %336 = vmatpush1.bf16.msra.mxu0 %v240
  %337 = vmatprep.subr.bf16.mxu0 %v243
  %338 = vmatpush1.bf16.msra.mxu0 %v242
  %339 = vmatprep.subr.bf16.mxu0 0
  %340 = vmatpush1.bf16.msra.mxu0 0
  %341 = vmatprep.subr.bf16.mxu0 0
  %342 = vmatpush1.bf16.msra.mxu0 0
  %343 = vmatprep.subr.bf16.mxu0 0
  %344 = vmatpush1.bf16.msra.mxu0 0
  %345 = vmatprep.subr.bf16.mxu0 0
  %346 = vmatpush1.bf16.msra.mxu0 0
  %347 = vmatprep.subr.bf16.mxu0 0
  %348 = vmatpush1.bf16.msra.mxu0 0
  %349 = vmatprep.subr.bf16.mxu0 0
  %350 = vmatpush1.bf16.msra.mxu0 0
  %351 = vmatprep.subr.bf16.mxu0 0
  %352 = vmatpush1.bf16.msra.mxu0 0
  %353 = vmatprep.subr.bf16.mxu0 0
  %354 = vmatpush1.bf16.msra.mxu0 0
  %355 = vmatprep.subr.bf16.mxu0 0
  %356 = vmatpush1.bf16.msra.mxu0 0
  %357 = vmatprep.subr.bf16.mxu0 0
  %358 = vmatpush1.bf16.msra.mxu0 0
  %359 = vmatprep.subr.bf16.mxu0 0
  %360 = vmatpush1.bf16.msra.mxu0 0
  %361 = vmatprep.subr.bf16.mxu0 0
  %362 = vmatpush1.bf16.msra.mxu0 0
  %363 = vmatprep.mubr.bf16.mxu0 0
  %364 = vmatmul.mubr.bf16.gmra.mrb[0].mxu0 %v329
  %v365 = vpop.f32.mrb[0].mxu0
  %v366 = vadd.f32 0.0, %v365
  %v367 = vpop.f32.mrb[0].mxu0
  %v368 = vadd.f32 0.0, %v367
  %v369 = vpop.f32.mrb[0].mxu0
  %v370 = vpop.f32.mrb[0].mxu0
  %371 = vdwg.mxu0
  %v372 = vadd.f32 %v158, %v366
  %v373 = vadd.f32 %v160, %v368
  %v374 = vxor.u32 %v372, 2147483648
  %v375 = vxor.u32 %v373, 2147483648
  %v376 = vmul.f32 %v374, 1.442695
  %v377 = vpow.pop %v376
  %v378 = vmul.f32 %v375, 1.442695
  %v379 = vpow.pop %v378
  %v380 = vadd.f32 %v377, 1.0
  %v381 = vadd.f32 %v379, 1.0
  %v382 = vrcp.pop %v380
  %v383 = vmul.f32 1.0, %v382
  %v384 = vrcp.pop %v381
  %v385 = vmul.f32 1.0, %v384
  %v386 = vtanh.pop %v372
  %v387 = vtanh.pop %v373
  %v388 = vmul.f32 %v385, 0.0
  %390 = vrot.lane.b32.xlu0 %v387, 64
  %v391 = vpop.permute.xlu0 %390
  %v393 = vmul.f32 %v385, %v391
  %395 = vrot.lane.b32.xlu0 %v393, 32
  %v396 = vpop.permute.xlu0 %395
  %v398 = vadd.f32 %v388, %v396
  %v399 = vtanh.pop %v398
  %401 = vrot.lane.b32.xlu0 %v399, 64
  %v402 = vpop.permute.xlu0 %401
  %v404 = vmul.f32 %v385, %v402
  %v405 = vmul.f32 %v383, %v314
  %407 = vrot.lane.b32.xlu0 %v386, 64
  %v408 = vpop.permute.xlu0 %407
  %v410 = vmul.f32 %v383, %v408
  %412 = vrot.lane.b32.xlu0 %v410, 32
  %v413 = vpop.permute.xlu0 %412
  %v415 = vadd.f32 %v405, %v413
  %v416 = vtanh.pop %v415
  %418 = vrot.lane.b32.xlu0 %v416, 64
  %v419 = vpop.permute.xlu0 %418
  %v421 = vmul.f32 %v383, %v419
  %423 = vrot.lane.b32.xlu0 %v421, 32
  %v424 = vpop.permute.xlu0 %423
  %427 = vrot.lane.b32.xlu0 %v404, 64
  %v428 = vpop.permute.xlu0 %427
  %v430 = vsel %vm325, %v424, %v428
  %v431 = vpack.c.bf16 %v430, %v430
  %v433 = vsel %vm252, %v431, 0
  %435 = vmatprep.subr.bf16.mxu0 %v237
  %436 = vmatpush1.bf16.msra.mxu0 %v236
  %437 = vmatprep.subr.bf16.mxu0 %v239
  %438 = vmatpush1.bf16.msra.mxu0 %v238
  %439 = vmatprep.subr.bf16.mxu0 %v241
  %440 = vmatpush1.bf16.msra.mxu0 %v240
  %441 = vmatprep.subr.bf16.mxu0 %v243
  %442 = vmatpush1.bf16.msra.mxu0 %v242
  %443 = vmatprep.subr.bf16.mxu0 0
  %444 = vmatpush1.bf16.msra.mxu0 0
  %445 = vmatprep.subr.bf16.mxu0 0
  %446 = vmatpush1.bf16.msra.mxu0 0
  %447 = vmatprep.subr.bf16.mxu0 0
  %448 = vmatpush1.bf16.msra.mxu0 0
  %449 = vmatprep.subr.bf16.mxu0 0
  %450 = vmatpush1.bf16.msra.mxu0 0
  %451 = vmatprep.subr.bf16.mxu0 0
  %452 = vmatpush1.bf16.msra.mxu0 0
  %453 = vmatprep.subr.bf16.mxu0 0
  %454 = vmatpush1.bf16.msra.mxu0 0
  %455 = vmatprep.subr.bf16.mxu0 0
  %456 = vmatpush1.bf16.msra.mxu0 0
  %457 = vmatprep.subr.bf16.mxu0 0
  %458 = vmatpush1.bf16.msra.mxu0 0
  %459 = vmatprep.subr.bf16.mxu0 0
  %460 = vmatpush1.bf16.msra.mxu0 0
  %461 = vmatprep.subr.bf16.mxu0 0
  %462 = vmatpush1.bf16.msra.mxu0 0
  %463 = vmatprep.subr.bf16.mxu0 0
  %464 = vmatpush1.bf16.msra.mxu0 0
  %465 = vmatprep.subr.bf16.mxu0 0
  %466 = vmatpush1.bf16.msra.mxu0 0
  %467 = vmatprep.mubr.bf16.mxu0 0
  %468 = vmatmul.mubr.bf16.gmra.mrb[0].mxu0 %v433
  %v469 = vpop.f32.mrb[0].mxu0
  %v470 = vadd.f32 0.0, %v469
  %v471 = vpop.f32.mrb[0].mxu0
  %v472 = vadd.f32 0.0, %v471
  %v473 = vpop.f32.mrb[0].mxu0
  %v474 = vpop.f32.mrb[0].mxu0
  %475 = vdwg.mxu0
  %v476 = vadd.f32 %v164, %v470
  %v477 = vadd.f32 %v166, %v472
  %v478 = vxor.u32 %v476, 2147483648
  %v479 = vxor.u32 %v477, 2147483648
  %v480 = vmul.f32 %v478, 1.442695
  %v481 = vpow.pop %v480
  %v482 = vmul.f32 %v479, 1.442695
  %v483 = vpow.pop %v482
  %v484 = vadd.f32 %v481, 1.0
  %v485 = vadd.f32 %v483, 1.0
  %v486 = vrcp.pop %v484
  %v487 = vmul.f32 1.0, %v486
  %v488 = vrcp.pop %v485
  %v489 = vmul.f32 1.0, %v488
  %v490 = vtanh.pop %v476
  %v491 = vtanh.pop %v477
  %v492 = vmul.f32 %v489, %v398
  %494 = vrot.lane.b32.xlu0 %v491, 64
  %v495 = vpop.permute.xlu0 %494
  %v497 = vmul.f32 %v489, %v495
  %499 = vrot.lane.b32.xlu0 %v497, 32
  %v500 = vpop.permute.xlu0 %499
  %v502 = vadd.f32 %v492, %v500
  %v503 = vtanh.pop %v502
  %505 = vrot.lane.b32.xlu0 %v503, 64
  %v506 = vpop.permute.xlu0 %505
  %v508 = vmul.f32 %v489, %v506
  %v509 = vmul.f32 %v487, %v415
  %511 = vrot.lane.b32.xlu0 %v490, 64
  %v512 = vpop.permute.xlu0 %511
  %v514 = vmul.f32 %v487, %v512
  %516 = vrot.lane.b32.xlu0 %v514, 32
  %v517 = vpop.permute.xlu0 %516
  %v519 = vadd.f32 %v509, %v517
  %v520 = vtanh.pop %v519
  %522 = vrot.lane.b32.xlu0 %v520, 64
  %v523 = vpop.permute.xlu0 %522
  %v525 = vmul.f32 %v487, %v523
  %527 = vrot.lane.b32.xlu0 %v525, 32
  %v528 = vpop.permute.xlu0 %527
  %531 = vrot.lane.b32.xlu0 %v508, 64
  %v532 = vpop.permute.xlu0 %531
  %v534 = vsel %vm325, %v528, %v532
  %v535 = vpack.c.bf16 %v534, %v534
  %v537 = vsel %vm252, %v535, 0
  %539 = vmatprep.subr.bf16.mxu0 %v237
  %540 = vmatpush1.bf16.msra.mxu0 %v236
  %541 = vmatprep.subr.bf16.mxu0 %v239
  %542 = vmatpush1.bf16.msra.mxu0 %v238
  %543 = vmatprep.subr.bf16.mxu0 %v241
  %544 = vmatpush1.bf16.msra.mxu0 %v240
  %545 = vmatprep.subr.bf16.mxu0 %v243
  %546 = vmatpush1.bf16.msra.mxu0 %v242
  %547 = vmatprep.subr.bf16.mxu0 0
  %548 = vmatpush1.bf16.msra.mxu0 0
  %549 = vmatprep.subr.bf16.mxu0 0
  %550 = vmatpush1.bf16.msra.mxu0 0
  %551 = vmatprep.subr.bf16.mxu0 0
  %552 = vmatpush1.bf16.msra.mxu0 0
  %553 = vmatprep.subr.bf16.mxu0 0
  %554 = vmatpush1.bf16.msra.mxu0 0
  %555 = vmatprep.subr.bf16.mxu0 0
  %556 = vmatpush1.bf16.msra.mxu0 0
  %557 = vmatprep.subr.bf16.mxu0 0
  %558 = vmatpush1.bf16.msra.mxu0 0
  %559 = vmatprep.subr.bf16.mxu0 0
  %560 = vmatpush1.bf16.msra.mxu0 0
  %561 = vmatprep.subr.bf16.mxu0 0
  %562 = vmatpush1.bf16.msra.mxu0 0
  %563 = vmatprep.subr.bf16.mxu0 0
  %564 = vmatpush1.bf16.msra.mxu0 0
  %565 = vmatprep.subr.bf16.mxu0 0
  %566 = vmatpush1.bf16.msra.mxu0 0
  %567 = vmatprep.subr.bf16.mxu0 0
  %568 = vmatpush1.bf16.msra.mxu0 0
  %569 = vmatprep.subr.bf16.mxu0 0
  %570 = vmatpush1.bf16.msra.mxu0 0
  %571 = vmatprep.mubr.bf16.mxu0 0
  %572 = vmatmul.mubr.bf16.gmra.mrb[0].mxu0 %v537
  %v573 = vpop.f32.mrb[0].mxu0
  %v574 = vadd.f32 0.0, %v573
  %v575 = vpop.f32.mrb[0].mxu0
  %v576 = vadd.f32 0.0, %v575
  %v577 = vpop.f32.mrb[0].mxu0
  %v578 = vpop.f32.mrb[0].mxu0
  %579 = vdwg.mxu0
  %v580 = vadd.f32 %v170, %v574
  %v581 = vadd.f32 %v172, %v576
  %v582 = vxor.u32 %v580, 2147483648
  %v583 = vxor.u32 %v581, 2147483648
  %v584 = vmul.f32 %v582, 1.442695
  %v585 = vpow.pop %v584
  %v586 = vmul.f32 %v583, 1.442695
  %v587 = vpow.pop %v586
  %v588 = vadd.f32 %v585, 1.0
  %v589 = vadd.f32 %v587, 1.0
  %v590 = vrcp.pop %v588
  %v591 = vmul.f32 1.0, %v590
  %v592 = vrcp.pop %v589
  %v593 = vmul.f32 1.0, %v592
  %v594 = vtanh.pop %v580
  %v595 = vtanh.pop %v581
  %v596 = vmul.f32 %v593, %v502
  %598 = vrot.lane.b32.xlu0 %v595, 64
  %v599 = vpop.permute.xlu0 %598
  %v601 = vmul.f32 %v593, %v599
  %603 = vrot.lane.b32.xlu0 %v601, 32
  %v604 = vpop.permute.xlu0 %603
  %v606 = vadd.f32 %v596, %v604
  %v607 = vtanh.pop %v606
  %609 = vrot.lane.b32.xlu0 %v607, 64
  %v610 = vpop.permute.xlu0 %609
  %v612 = vmul.f32 %v593, %v610
  %v613 = vmul.f32 %v591, %v519
  %615 = vrot.lane.b32.xlu0 %v594, 64
  %v616 = vpop.permute.xlu0 %615
  %v618 = vmul.f32 %v591, %v616
  %620 = vrot.lane.b32.xlu0 %v618, 32
  %v621 = vpop.permute.xlu0 %620
  %v623 = vadd.f32 %v613, %v621
  %v624 = vtanh.pop %v623
  %626 = vrot.lane.b32.xlu0 %v624, 64
  %v627 = vpop.permute.xlu0 %626
  %v629 = vmul.f32 %v591, %v627
  %631 = vrot.lane.b32.xlu0 %v629, 32
  %v632 = vpop.permute.xlu0 %631
  %635 = vrot.lane.b32.xlu0 %v612, 64
  %v636 = vpop.permute.xlu0 %635
  %v638 = vsel %vm325, %v632, %v636
  %v639 = vpack.c.bf16 %v638, %v638
  %v641 = vsel %vm252, %v639, 0
  %643 = vmatprep.subr.bf16.mxu0 %v237
  %644 = vmatpush1.bf16.msra.mxu0 %v236
  %645 = vmatprep.subr.bf16.mxu0 %v239
  %646 = vmatpush1.bf16.msra.mxu0 %v238
  %647 = vmatprep.subr.bf16.mxu0 %v241
  %648 = vmatpush1.bf16.msra.mxu0 %v240
  %649 = vmatprep.subr.bf16.mxu0 %v243
  %650 = vmatpush1.bf16.msra.mxu0 %v242
  %651 = vmatprep.subr.bf16.mxu0 0
  %652 = vmatpush1.bf16.msra.mxu0 0
  %653 = vmatprep.subr.bf16.mxu0 0
  %654 = vmatpush1.bf16.msra.mxu0 0
  %655 = vmatprep.subr.bf16.mxu0 0
  %656 = vmatpush1.bf16.msra.mxu0 0
  %657 = vmatprep.subr.bf16.mxu0 0
  %658 = vmatpush1.bf16.msra.mxu0 0
  %659 = vmatprep.subr.bf16.mxu0 0
  %660 = vmatpush1.bf16.msra.mxu0 0
  %661 = vmatprep.subr.bf16.mxu0 0
  %662 = vmatpush1.bf16.msra.mxu0 0
  %663 = vmatprep.subr.bf16.mxu0 0
  %664 = vmatpush1.bf16.msra.mxu0 0
  %665 = vmatprep.subr.bf16.mxu0 0
  %666 = vmatpush1.bf16.msra.mxu0 0
  %667 = vmatprep.subr.bf16.mxu0 0
  %668 = vmatpush1.bf16.msra.mxu0 0
  %669 = vmatprep.subr.bf16.mxu0 0
  %670 = vmatpush1.bf16.msra.mxu0 0
  %671 = vmatprep.subr.bf16.mxu0 0
  %672 = vmatpush1.bf16.msra.mxu0 0
  %673 = vmatprep.subr.bf16.mxu0 0
  %674 = vmatpush1.bf16.msra.mxu0 0
  %675 = vmatprep.mubr.bf16.mxu0 0
  %676 = vmatmul.mubr.bf16.gmra.mrb[0].mxu0 %v641
  %v677 = vpop.f32.mrb[0].mxu0
  %v678 = vadd.f32 0.0, %v677
  %v679 = vpop.f32.mrb[0].mxu0
  %v680 = vadd.f32 0.0, %v679
  %v681 = vpop.f32.mrb[0].mxu0
  %v682 = vpop.f32.mrb[0].mxu0
  %683 = vdwg.mxu0
  %v684 = vadd.f32 %v176, %v678
  %v685 = vadd.f32 %v178, %v680
  %v686 = vxor.u32 %v684, 2147483648
  %v687 = vxor.u32 %v685, 2147483648
  %v688 = vmul.f32 %v686, 1.442695
  %v689 = vpow.pop %v688
  %v690 = vmul.f32 %v687, 1.442695
  %v691 = vpow.pop %v690
  %v692 = vadd.f32 %v689, 1.0
  %v693 = vadd.f32 %v691, 1.0
  %v694 = vrcp.pop %v692
  %v695 = vmul.f32 1.0, %v694
  %v696 = vrcp.pop %v693
  %v697 = vmul.f32 1.0, %v696
  %v698 = vtanh.pop %v684
  %v699 = vtanh.pop %v685
  %v700 = vmul.f32 %v697, %v606
  %702 = vrot.lane.b32.xlu0 %v699, 64
  %v703 = vpop.permute.xlu0 %702
  %v705 = vmul.f32 %v697, %v703
  %707 = vrot.lane.b32.xlu0 %v705, 32
  %v708 = vpop.permute.xlu0 %707
  %v710 = vadd.f32 %v700, %v708
  %v711 = vtanh.pop %v710
  %713 = vrot.lane.b32.xlu0 %v711, 64
  %v714 = vpop.permute.xlu0 %713
  %v716 = vmul.f32 %v697, %v714
  %v717 = vmul.f32 %v695, %v623
  %719 = vrot.lane.b32.xlu0 %v698, 64
  %v720 = vpop.permute.xlu0 %719
  %v722 = vmul.f32 %v695, %v720
  %724 = vrot.lane.b32.xlu0 %v722, 32
  %v725 = vpop.permute.xlu0 %724
  %v727 = vadd.f32 %v717, %v725
  %v728 = vtanh.pop %v727
  %730 = vrot.lane.b32.xlu0 %v728, 64
  %v731 = vpop.permute.xlu0 %730
  %v733 = vmul.f32 %v695, %v731
  %735 = vrot.lane.b32.xlu0 %v733, 32
  %v736 = vpop.permute.xlu0 %735
  %739 = vrot.lane.b32.xlu0 %v716, 64
  %v740 = vpop.permute.xlu0 %739
  %v742 = vsel %vm325, %v736, %v740
  %v743 = vpack.c.bf16 %v742, %v742
  %v745 = vsel %vm252, %v743, 0
  %747 = vmatprep.subr.bf16.mxu0 %v237
  %748 = vmatpush1.bf16.msra.mxu0 %v236
  %749 = vmatprep.subr.bf16.mxu0 %v239
  %750 = vmatpush1.bf16.msra.mxu0 %v238
  %751 = vmatprep.subr.bf16.mxu0 %v241
  %752 = vmatpush1.bf16.msra.mxu0 %v240
  %753 = vmatprep.subr.bf16.mxu0 %v243
  %754 = vmatpush1.bf16.msra.mxu0 %v242
  %755 = vmatprep.subr.bf16.mxu0 0
  %756 = vmatpush1.bf16.msra.mxu0 0
  %757 = vmatprep.subr.bf16.mxu0 0
  %758 = vmatpush1.bf16.msra.mxu0 0
  %759 = vmatprep.subr.bf16.mxu0 0
  %760 = vmatpush1.bf16.msra.mxu0 0
  %761 = vmatprep.subr.bf16.mxu0 0
  %762 = vmatpush1.bf16.msra.mxu0 0
  %763 = vmatprep.subr.bf16.mxu0 0
  %764 = vmatpush1.bf16.msra.mxu0 0
  %765 = vmatprep.subr.bf16.mxu0 0
  %766 = vmatpush1.bf16.msra.mxu0 0
  %767 = vmatprep.subr.bf16.mxu0 0
  %768 = vmatpush1.bf16.msra.mxu0 0
  %769 = vmatprep.subr.bf16.mxu0 0
  %770 = vmatpush1.bf16.msra.mxu0 0
  %771 = vmatprep.subr.bf16.mxu0 0
  %772 = vmatpush1.bf16.msra.mxu0 0
  %773 = vmatprep.subr.bf16.mxu0 0
  %774 = vmatpush1.bf16.msra.mxu0 0
  %775 = vmatprep.subr.bf16.mxu0 0
  %776 = vmatpush1.bf16.msra.mxu0 0
  %777 = vmatprep.subr.bf16.mxu0 0
  %778 = vmatpush1.bf16.msra.mxu0 0
  %779 = vmatprep.mubr.bf16.mxu0 0
  %780 = vmatmul.mubr.bf16.gmra.mrb[0].mxu0 %v745
  %v781 = vpop.f32.mrb[0].mxu0
  %v782 = vadd.f32 0.0, %v781
  %v783 = vpop.f32.mrb[0].mxu0
  %v784 = vadd.f32 0.0, %v783
  %v785 = vpop.f32.mrb[0].mxu0
  %v786 = vpop.f32.mrb[0].mxu0
  %787 = vdwg.mxu0
  %v788 = vadd.f32 %v182, %v782
  %v789 = vadd.f32 %v184, %v784
  %v790 = vxor.u32 %v788, 2147483648
  %v791 = vxor.u32 %v789, 2147483648
  %v792 = vmul.f32 %v790, 1.442695
  %v793 = vpow.pop %v792
  %v794 = vmul.f32 %v791, 1.442695
  %v795 = vpow.pop %v794
  %v796 = vadd.f32 %v793, 1.0
  %v797 = vadd.f32 %v795, 1.0
  %v798 = vrcp.pop %v796
  %v799 = vmul.f32 1.0, %v798
  %v800 = vrcp.pop %v797
  %v801 = vmul.f32 1.0, %v800
  %v802 = vtanh.pop %v788
  %v803 = vtanh.pop %v789
  %v804 = vmul.f32 %v801, %v710
  %806 = vrot.lane.b32.xlu0 %v803, 64
  %v807 = vpop.permute.xlu0 %806
  %v809 = vmul.f32 %v801, %v807
  %811 = vrot.lane.b32.xlu0 %v809, 32
  %v812 = vpop.permute.xlu0 %811
  %v814 = vadd.f32 %v804, %v812
  %v815 = vtanh.pop %v814
  %817 = vrot.lane.b32.xlu0 %v815, 64
  %v818 = vpop.permute.xlu0 %817
  %v820 = vmul.f32 %v801, %v818
  %v821 = vmul.f32 %v799, %v727
  %823 = vrot.lane.b32.xlu0 %v802, 64
  %v824 = vpop.permute.xlu0 %823
  %v826 = vmul.f32 %v799, %v824
  %828 = vrot.lane.b32.xlu0 %v826, 32
  %v829 = vpop.permute.xlu0 %828
  %v831 = vadd.f32 %v821, %v829
  %v832 = vtanh.pop %v831
  %834 = vrot.lane.b32.xlu0 %v832, 64
  %v835 = vpop.permute.xlu0 %834
  %v837 = vmul.f32 %v799, %v835
  %839 = vrot.lane.b32.xlu0 %v837, 32
  %v840 = vpop.permute.xlu0 %839
  %843 = vrot.lane.b32.xlu0 %v820, 64
  %v844 = vpop.permute.xlu0 %843
  %v846 = vsel %vm325, %v840, %v844
  %v847 = vpack.c.bf16 %v846, %v846
  %v849 = vsel %vm252, %v847, 0
  %851 = vmatprep.subr.bf16.mxu0 %v237
  %852 = vmatpush1.bf16.msra.mxu0 %v236
  %853 = vmatprep.subr.bf16.mxu0 %v239
  %854 = vmatpush1.bf16.msra.mxu0 %v238
  %855 = vmatprep.subr.bf16.mxu0 %v241
  %856 = vmatpush1.bf16.msra.mxu0 %v240
  %857 = vmatprep.subr.bf16.mxu0 %v243
  %858 = vmatpush1.bf16.msra.mxu0 %v242
  %859 = vmatprep.subr.bf16.mxu0 0
  %860 = vmatpush1.bf16.msra.mxu0 0
  %861 = vmatprep.subr.bf16.mxu0 0
  %862 = vmatpush1.bf16.msra.mxu0 0
  %863 = vmatprep.subr.bf16.mxu0 0
  %864 = vmatpush1.bf16.msra.mxu0 0
  %865 = vmatprep.subr.bf16.mxu0 0
  %866 = vmatpush1.bf16.msra.mxu0 0
  %867 = vmatprep.subr.bf16.mxu0 0
  %868 = vmatpush1.bf16.msra.mxu0 0
  %869 = vmatprep.subr.bf16.mxu0 0
  %870 = vmatpush1.bf16.msra.mxu0 0
  %871 = vmatprep.subr.bf16.mxu0 0
  %872 = vmatpush1.bf16.msra.mxu0 0
  %873 = vmatprep.subr.bf16.mxu0 0
  %874 = vmatpush1.bf16.msra.mxu0 0
  %875 = vmatprep.subr.bf16.mxu0 0
  %876 = vmatpush1.bf16.msra.mxu0 0
  %877 = vmatprep.subr.bf16.mxu0 0
  %878 = vmatpush1.bf16.msra.mxu0 0
  %879 = vmatprep.subr.bf16.mxu0 0
  %880 = vmatpush1.bf16.msra.mxu0 0
  %881 = vmatprep.subr.bf16.mxu0 0
  %882 = vmatpush1.bf16.msra.mxu0 0
  %883 = vmatprep.mubr.bf16.mxu0 0
  %884 = vmatmul.mubr.bf16.gmra.mrb[0].mxu0 %v849
  %v885 = vpop.f32.mrb[0].mxu0
  %v886 = vadd.f32 0.0, %v885
  %v887 = vpop.f32.mrb[0].mxu0
  %v888 = vadd.f32 0.0, %v887
  %v889 = vpop.f32.mrb[0].mxu0
  %v890 = vpop.f32.mrb[0].mxu0
  %891 = vdwg.mxu0
  %v892 = vadd.f32 %v188, %v886
  %v893 = vadd.f32 %v190, %v888
  %v894 = vxor.u32 %v892, 2147483648
  %v895 = vxor.u32 %v893, 2147483648
  %v896 = vmul.f32 %v894, 1.442695
  %v897 = vpow.pop %v896
  %v898 = vmul.f32 %v895, 1.442695
  %v899 = vpow.pop %v898
  %v900 = vadd.f32 %v897, 1.0
  %v901 = vadd.f32 %v899, 1.0
  %v902 = vrcp.pop %v900
  %v903 = vmul.f32 1.0, %v902
  %v904 = vrcp.pop %v901
  %v905 = vmul.f32 1.0, %v904
  %v906 = vtanh.pop %v892
  %v907 = vtanh.pop %v893
  %v908 = vmul.f32 %v905, %v814
  %910 = vrot.lane.b32.xlu0 %v907, 64
  %v911 = vpop.permute.xlu0 %910
  %v913 = vmul.f32 %v905, %v911
  %915 = vrot.lane.b32.xlu0 %v913, 32
  %v916 = vpop.permute.xlu0 %915
  %v918 = vadd.f32 %v908, %v916
  %v919 = vtanh.pop %v918
  %921 = vrot.lane.b32.xlu0 %v919, 64
  %v922 = vpop.permute.xlu0 %921
  %v924 = vmul.f32 %v905, %v922
  %v925 = vmul.f32 %v903, %v831
  %927 = vrot.lane.b32.xlu0 %v906, 64
  %v928 = vpop.permute.xlu0 %927
  %v930 = vmul.f32 %v903, %v928
  %932 = vrot.lane.b32.xlu0 %v930, 32
  %v933 = vpop.permute.xlu0 %932
  %v935 = vadd.f32 %v925, %v933
  %v936 = vtanh.pop %v935
  %938 = vrot.lane.b32.xlu0 %v936, 64
  %v939 = vpop.permute.xlu0 %938
  %v941 = vmul.f32 %v903, %v939
  %943 = vrot.lane.b32.xlu0 %v941, 32
  %v944 = vpop.permute.xlu0 %943
  %947 = vrot.lane.b32.xlu0 %v924, 64
  %v948 = vpop.permute.xlu0 %947
  %v950 = vsel %vm325, %v944, %v948
  %v951 = vpack.c.bf16 %v950, %v950
  %v953 = vsel %vm252, %v951, 0
  %955 = vmatprep.subr.bf16.mxu0 %v237
  %956 = vmatpush1.bf16.msra.mxu0 %v236
  %957 = vmatprep.subr.bf16.mxu0 %v239
  %958 = vmatpush1.bf16.msra.mxu0 %v238
  %959 = vmatprep.subr.bf16.mxu0 %v241
  %960 = vmatpush1.bf16.msra.mxu0 %v240
  %961 = vmatprep.subr.bf16.mxu0 %v243
  %962 = vmatpush1.bf16.msra.mxu0 %v242
  %963 = vmatprep.subr.bf16.mxu0 0
  %964 = vmatpush1.bf16.msra.mxu0 0
  %965 = vmatprep.subr.bf16.mxu0 0
  %966 = vmatpush1.bf16.msra.mxu0 0
  %967 = vmatprep.subr.bf16.mxu0 0
  %968 = vmatpush1.bf16.msra.mxu0 0
  %969 = vmatprep.subr.bf16.mxu0 0
  %970 = vmatpush1.bf16.msra.mxu0 0
  %971 = vmatprep.subr.bf16.mxu0 0
  %972 = vmatpush1.bf16.msra.mxu0 0
  %973 = vmatprep.subr.bf16.mxu0 0
  %974 = vmatpush1.bf16.msra.mxu0 0
  %975 = vmatprep.subr.bf16.mxu0 0
  %976 = vmatpush1.bf16.msra.mxu0 0
  %977 = vmatprep.subr.bf16.mxu0 0
  %978 = vmatpush1.bf16.msra.mxu0 0
  %979 = vmatprep.subr.bf16.mxu0 0
  %980 = vmatpush1.bf16.msra.mxu0 0
  %981 = vmatprep.subr.bf16.mxu0 0
  %982 = vmatpush1.bf16.msra.mxu0 0
  %983 = vmatprep.subr.bf16.mxu0 0
  %984 = vmatpush1.bf16.msra.mxu0 0
  %985 = vmatprep.subr.bf16.mxu0 0
  %986 = vmatpush1.bf16.msra.mxu0 0
  %987 = vmatprep.mubr.bf16.mxu0 0
  %988 = vmatmul.mubr.bf16.gmra.mrb[0].mxu0 %v953
  %v989 = vpop.f32.mrb[0].mxu0
  %v990 = vadd.f32 0.0, %v989
  %v991 = vpop.f32.mrb[0].mxu0
  %v992 = vadd.f32 0.0, %v991
  %v993 = vpop.f32.mrb[0].mxu0
  %v994 = vpop.f32.mrb[0].mxu0
  %995 = vdwg.mxu0
  %v996 = vadd.f32 %v194, %v990
  %v997 = vadd.f32 %v196, %v992
  %v998 = vxor.u32 %v996, 2147483648
  %v999 = vxor.u32 %v997, 2147483648
  %v1000 = vmul.f32 %v998, 1.442695
  %v1001 = vpow.pop %v1000
  %v1002 = vmul.f32 %v999, 1.442695
  %v1003 = vpow.pop %v1002
  %v1004 = vadd.f32 %v1001, 1.0
  %v1005 = vadd.f32 %v1003, 1.0
  %v1006 = vrcp.pop %v1004
  %v1007 = vmul.f32 1.0, %v1006
  %v1008 = vrcp.pop %v1005
  %v1009 = vmul.f32 1.0, %v1008
  %v1010 = vtanh.pop %v996
  %v1011 = vtanh.pop %v997
  %v1012 = vmul.f32 %v1009, %v918
  %1014 = vrot.lane.b32.xlu0 %v1011, 64
  %v1015 = vpop.permute.xlu0 %1014
  %v1017 = vmul.f32 %v1009, %v1015
  %1019 = vrot.lane.b32.xlu0 %v1017, 32
  %v1020 = vpop.permute.xlu0 %1019
  %v1022 = vadd.f32 %v1012, %v1020
  %v1023 = vtanh.pop %v1022
  %1025 = vrot.lane.b32.xlu0 %v1023, 64
  %v1026 = vpop.permute.xlu0 %1025
  %v1028 = vmul.f32 %v1009, %v1026
  %v1029 = vmul.f32 %v1007, %v935
  %1031 = vrot.lane.b32.xlu0 %v1010, 64
  %v1032 = vpop.permute.xlu0 %1031
  %v1034 = vmul.f32 %v1007, %v1032
  %1036 = vrot.lane.b32.xlu0 %v1034, 32
  %v1037 = vpop.permute.xlu0 %1036
  %v1039 = vadd.f32 %v1029, %v1037
  %v1040 = vtanh.pop %v1039
  %1042 = vrot.lane.b32.xlu0 %v1040, 64
  %v1043 = vpop.permute.xlu0 %1042
  %v1045 = vmul.f32 %v1007, %v1043
  %1047 = vrot.lane.b32.xlu0 %v1045, 32
  %v1048 = vpop.permute.xlu0 %1047
  %1051 = vrot.lane.b32.xlu0 %v1028, 64
  %v1052 = vpop.permute.xlu0 %1051
  %v1054 = vsel %vm325, %v1048, %v1052
  %v1055 = vpack.c.bf16 %v1054, %v1054
  %v1057 = vsel %vm252, %v1055, 0
  %1059 = vmatprep.subr.bf16.mxu0 %v237
  %1060 = vmatpush1.bf16.msra.mxu0 %v236
  %1061 = vmatprep.subr.bf16.mxu0 %v239
  %1062 = vmatpush1.bf16.msra.mxu0 %v238
  %1063 = vmatprep.subr.bf16.mxu0 %v241
  %1064 = vmatpush1.bf16.msra.mxu0 %v240
  %1065 = vmatprep.subr.bf16.mxu0 %v243
  %1066 = vmatpush1.bf16.msra.mxu0 %v242
  %1067 = vmatprep.subr.bf16.mxu0 0
  %1068 = vmatpush1.bf16.msra.mxu0 0
  %1069 = vmatprep.subr.bf16.mxu0 0
  %1070 = vmatpush1.bf16.msra.mxu0 0
  %1071 = vmatprep.subr.bf16.mxu0 0
  %1072 = vmatpush1.bf16.msra.mxu0 0
  %1073 = vmatprep.subr.bf16.mxu0 0
  %1074 = vmatpush1.bf16.msra.mxu0 0
  %1075 = vmatprep.subr.bf16.mxu0 0
  %1076 = vmatpush1.bf16.msra.mxu0 0
  %1077 = vmatprep.subr.bf16.mxu0 0
  %1078 = vmatpush1.bf16.msra.mxu0 0
  %1079 = vmatprep.subr.bf16.mxu0 0
  %1080 = vmatpush1.bf16.msra.mxu0 0
  %1081 = vmatprep.subr.bf16.mxu0 0
  %1082 = vmatpush1.bf16.msra.mxu0 0
  %1083 = vmatprep.subr.bf16.mxu0 0
  %1084 = vmatpush1.bf16.msra.mxu0 0
  %1085 = vmatprep.subr.bf16.mxu0 0
  %1086 = vmatpush1.bf16.msra.mxu0 0
  %1087 = vmatprep.subr.bf16.mxu0 0
  %1088 = vmatpush1.bf16.msra.mxu0 0
  %1089 = vmatprep.subr.bf16.mxu0 0
  %1090 = vmatpush1.bf16.msra.mxu0 0
  %1091 = vmatprep.mubr.bf16.mxu0 0
  %1092 = vmatmul.mubr.bf16.gmra.mrb[0].mxu0 %v1057
  %v1093 = vpop.f32.mrb[0].mxu0
  %v1094 = vpop.f32.mrb[0].mxu0
  %v1095 = vadd.f32 0.0, %v1094
  %v1096 = vpop.f32.mrb[0].mxu0
  %v1097 = vpop.f32.mrb[0].mxu0
  %1098 = vdwg.mxu0
  %v1099 = vadd.f32 %v201, %v1095
  %v1100 = vxor.u32 %v1099, 2147483648
  %v1101 = vmul.f32 %v1100, 1.442695
  %v1102 = vpow.pop %v1101
  %v1103 = vadd.f32 %v1102, 1.0
  %v1104 = vrcp.pop %v1103
  %v1105 = vmul.f32 1.0, %v1104
  %v1106 = vtanh.pop %v1099
  %v1107 = vmul.f32 %v1105, %v1022
  %1109 = vrot.lane.b32.xlu0 %v1106, 64
  %v1110 = vpop.permute.xlu0 %1109
  %v1112 = vmul.f32 %v1105, %v1110
  %1114 = vrot.lane.b32.xlu0 %v1112, 32
  %v1115 = vpop.permute.xlu0 %1114
  %v1117 = vadd.f32 %v1107, %v1115
  %v1118 = vtanh.pop %v1117
  %1120 = vrot.lane.b32.xlu0 %v1118, 64
  %v1121 = vpop.permute.xlu0 %1120
  %v1123 = vmul.f32 %v1105, %v1121
  %v1124 = vtanh.pop %v1028
  %v1125 = vtanh.pop %v1123
  %v1126 = vld [vmem:[%s4] sm:$0xff]
  %v1127 = vld [vmem:[%s4 + $0x8] sm:$0xff]
  %v1128 = vld [vmem:[%s4 + $0x10] sm:$0xff]
  %v1129 = vld [vmem:[%s4 + $0x18] sm:$0xff]
  %v1130 = vld [vmem:[%s5] sm:$0xff]
  %v1131 = vld [vmem:[%s5 + $0x8] sm:$0xff]
  %v1132 = vld [vmem:[%s5 + $0x10] sm:$0xff]
  %v1133 = vld [vmem:[%s5 + $0x18] sm:$0xff]
  %1135 = vrot.lane.b32.xlu0 %v1125, 32
  %v1136 = vpop.permute.xlu0 %1135
  %v1137 = vsel %vm325, %v1136, 0
  %1139 = vmatprep.subr.mxu0 0.0
  %1140 = vmatpush1.msra.mxu0 %v1130
  %1141 = vmatprep.subr.mxu0 0.0
  %1142 = vmatpush1.msra.mxu0 %v1131
  %1143 = vmatprep.subr.mxu0 0.0
  %1144 = vmatpush1.msra.mxu0 %v1132
  %1145 = vmatprep.subr.mxu0 0.0
  %1146 = vmatpush1.msra.mxu0 %v1133
  %1147 = vmatprep.subr.mxu0 0.0
  %1148 = vmatpush1.msra.mxu0 0.0
  %1149 = vmatprep.subr.mxu0 0.0
  %1150 = vmatpush1.msra.mxu0 0.0
  %1151 = vmatprep.subr.mxu0 0.0
  %1152 = vmatpush1.msra.mxu0 0.0
  %1153 = vmatprep.subr.mxu0 0.0
  %1154 = vmatpush1.msra.mxu0 0.0
  %1155 = vmatprep.subr.mxu0 0.0
  %1156 = vmatpush1.msra.mxu0 0.0
  %1157 = vmatprep.subr.mxu0 0.0
  %1158 = vmatpush1.msra.mxu0 0.0
  %1159 = vmatprep.subr.mxu0 0.0
  %1160 = vmatpush1.msra.mxu0 0.0
  %1161 = vmatprep.subr.mxu0 0.0
  %1162 = vmatpush1.msra.mxu0 0.0
  %1163 = vmatprep.subr.mxu0 0.0
  %1164 = vmatpush1.msra.mxu0 0.0
  %1165 = vmatprep.subr.mxu0 0.0
  %1166 = vmatpush1.msra.mxu0 0.0
  %1167 = vmatprep.subr.mxu0 0.0
  %1168 = vmatpush1.msra.mxu0 0.0
  %1169 = vmatprep.subr.mxu0 0.0
  %1170 = vmatpush1.msra.mxu0 0.0
  %1171 = vmatprep.subr.mxu0 0.0
  %1172 = vmatpush1.msra.mxu0 0.0
  %1173 = vmatprep.subr.mxu0 0.0
  %1174 = vmatpush1.msra.mxu0 0.0
  %1175 = vmatprep.subr.mxu0 0.0
  %1176 = vmatpush1.msra.mxu0 0.0
  %1177 = vmatprep.subr.mxu0 0.0
  %1178 = vmatpush1.msra.mxu0 0.0
  %1179 = vmatprep.subr.mxu0 0.0
  %1180 = vmatpush1.msra.mxu0 0.0
  %1181 = vmatprep.subr.mxu0 0.0
  %1182 = vmatpush1.msra.mxu0 0.0
  %1183 = vmatprep.subr.mxu0 0.0
  %1184 = vmatpush1.msra.mxu0 0.0
  %1185 = vmatprep.subr.mxu0 0.0
  %1186 = vmatpush1.msra.mxu0 0.0
  %1187 = vmatprep.subr.mxu0 0.0
  %1188 = vmatpush1.msra.mxu0 0.0
  %1189 = vmatprep.subr.mxu0 0.0
  %1190 = vmatpush1.msra.mxu0 0.0
  %1191 = vmatprep.subr.mxu0 0.0
  %1192 = vmatpush1.msra.mxu0 0.0
  %1193 = vmatprep.subr.mxu0 0.0
  %1194 = vmatpush1.msra.mxu0 0.0
  %1195 = vmatprep.subr.mxu0 0.0
  %1196 = vmatpush1.msra.mxu0 0.0
  %1197 = vmatprep.subr.mxu0 0.0
  %1198 = vmatpush1.msra.mxu0 0.0
  %1199 = vmatprep.subr.mxu0 0.0
  %1200 = vmatpush1.msra.mxu0 0.0
  %1201 = vmatprep.subr.mxu0 0.0
  %1202 = vmatpush1.msra.mxu0 0.0
  %1203 = vmatprep.mubr.f32.mxu0 0.0
  %1204 = vmatmul.mubr.f32.gmra.mrb[0].mxu0 %v1137
  %v1205 = vpop.f32.mrb[0].mxu0
  %v1206 = vadd.f32 0.0, %v1205
  %v1207 = vpop.f32.mrb[0].mxu0
  %1208 = vdwg.mxu0
  %1210 = vrot.lane.b32.xlu0 %v1124, 32
  %v1211 = vpop.permute.xlu0 %1210
  %v1212 = vsel %vm325, %v1211, 0
  %1214 = vmatprep.subr.mxu0 0.0
  %1215 = vmatpush1.msra.mxu0 %v1126
  %1216 = vmatprep.subr.mxu0 0.0
  %1217 = vmatpush1.msra.mxu0 %v1127
  %1218 = vmatprep.subr.mxu0 0.0
  %1219 = vmatpush1.msra.mxu0 %v1128
  %1220 = vmatprep.subr.mxu0 0.0
  %1221 = vmatpush1.msra.mxu0 %v1129
  %1222 = vmatprep.subr.mxu0 0.0
  %1223 = vmatpush1.msra.mxu0 0.0
  %1224 = vmatprep.subr.mxu0 0.0
  %1225 = vmatpush1.msra.mxu0 0.0
  %1226 = vmatprep.subr.mxu0 0.0
  %1227 = vmatpush1.msra.mxu0 0.0
  %1228 = vmatprep.subr.mxu0 0.0
  %1229 = vmatpush1.msra.mxu0 0.0
  %1230 = vmatprep.subr.mxu0 0.0
  %1231 = vmatpush1.msra.mxu0 0.0
  %1232 = vmatprep.subr.mxu0 0.0
  %1233 = vmatpush1.msra.mxu0 0.0
  %1234 = vmatprep.subr.mxu0 0.0
  %1235 = vmatpush1.msra.mxu0 0.0
  %1236 = vmatprep.subr.mxu0 0.0
  %1237 = vmatpush1.msra.mxu0 0.0
  %1238 = vmatprep.subr.mxu0 0.0
  %1239 = vmatpush1.msra.mxu0 0.0
  %1240 = vmatprep.subr.mxu0 0.0
  %1241 = vmatpush1.msra.mxu0 0.0
  %1242 = vmatprep.subr.mxu0 0.0
  %1243 = vmatpush1.msra.mxu0 0.0
  %1244 = vmatprep.subr.mxu0 0.0
  %1245 = vmatpush1.msra.mxu0 0.0
  %1246 = vmatprep.subr.mxu0 0.0
  %1247 = vmatpush1.msra.mxu0 0.0
  %1248 = vmatprep.subr.mxu0 0.0
  %1249 = vmatpush1.msra.mxu0 0.0
  %1250 = vmatprep.subr.mxu0 0.0
  %1251 = vmatpush1.msra.mxu0 0.0
  %1252 = vmatprep.subr.mxu0 0.0
  %1253 = vmatpush1.msra.mxu0 0.0
  %1254 = vmatprep.subr.mxu0 0.0
  %1255 = vmatpush1.msra.mxu0 0.0
  %1256 = vmatprep.subr.mxu0 0.0
  %1257 = vmatpush1.msra.mxu0 0.0
  %1258 = vmatprep.subr.mxu0 0.0
  %1259 = vmatpush1.msra.mxu0 0.0
  %1260 = vmatprep.subr.mxu0 0.0
  %1261 = vmatpush1.msra.mxu0 0.0
  %1262 = vmatprep.subr.mxu0 0.0
  %1263 = vmatpush1.msra.mxu0 0.0
  %1264 = vmatprep.subr.mxu0 0.0
  %1265 = vmatpush1.msra.mxu0 0.0
  %1266 = vmatprep.subr.mxu0 0.0
  %1267 = vmatpush1.msra.mxu0 0.0
  %1268 = vmatprep.subr.mxu0 0.0
  %1269 = vmatpush1.msra.mxu0 0.0
  %1270 = vmatprep.subr.mxu0 0.0
  %1271 = vmatpush1.msra.mxu0 0.0
  %1272 = vmatprep.subr.mxu0 0.0
  %1273 = vmatpush1.msra.mxu0 0.0
  %1274 = vmatprep.subr.mxu0 0.0
  %1275 = vmatpush1.msra.mxu0 0.0
  %1276 = vmatprep.subr.mxu0 0.0
  %1277 = vmatpush1.msra.mxu0 0.0
  %1278 = vmatprep.mubr.f32.mxu0 0.0
  %1279 = vmatmul.mubr.f32.gmra.mrb[0].mxu0 %v1212
  %v1280 = vpop.f32.mrb[0].mxu0
  %v1281 = vadd.f32 %v1206, %v1280
  %v1282 = vpop.f32.mrb[0].mxu0
  %1283 = vdwg.mxu0
  %v1284 = vld [vmem:[%s6] sm:$0x1]
  %v1286 = vlaneseq
  %v1287 = vshrl.u32 %v1286, 7
  %v1288 = vsub.s32 0, %v1287
  %v1289 = vrot.slane %v1284, %v1288
  %v1291 = vadd.f32 %v1281, %v1289
  %v1292 = vtanh.pop %v1291
  %v1293 = vld [vmem:[%s7] sm:$0xff]
  %v1294 = vld [vmem:[%s7 + $0x8] sm:$0xff]
  %v1295 = vld [vmem:[%s7 + $0x10] sm:$0xff]
  %v1296 = vld [vmem:[%s7 + $0x18] sm:$0xff]
  %v1297 = vld [vmem:[%s8] sm:$0x1]
  %v1299 = vlaneseq
  %v1300 = vshrl.u32 %v1299, 7
  %v1301 = vsub.s32 0, %v1300
  %v1302 = vrot.slane %v1297, %v1301
  %v1305 = vsel %vm325, %v1292, 0
  %1307 = vmatprep.subr.mxu0 0.0
  %1308 = vmatpush1.msra.mxu0 %v1293
  %1309 = vmatprep.subr.mxu0 0.0
  %1310 = vmatpush1.msra.mxu0 %v1294
  %1311 = vmatprep.subr.mxu0 0.0
  %1312 = vmatpush1.msra.mxu0 %v1295
  %1313 = vmatprep.subr.mxu0 0.0
  %1314 = vmatpush1.msra.mxu0 %v1296
  %1315 = vmatprep.subr.mxu0 0.0
  %1316 = vmatpush1.msra.mxu0 0.0
  %1317 = vmatprep.subr.mxu0 0.0
  %1318 = vmatpush1.msra.mxu0 0.0
  %1319 = vmatprep.subr.mxu0 0.0
  %1320 = vmatpush1.msra.mxu0 0.0
  %1321 = vmatprep.subr.mxu0 0.0
  %1322 = vmatpush1.msra.mxu0 0.0
  %1323 = vmatprep.subr.mxu0 0.0
  %1324 = vmatpush1.msra.mxu0 0.0
  %1325 = vmatprep.subr.mxu0 0.0
  %1326 = vmatpush1.msra.mxu0 0.0
  %1327 = vmatprep.subr.mxu0 0.0
  %1328 = vmatpush1.msra.mxu0 0.0
  %1329 = vmatprep.subr.mxu0 0.0
  %1330 = vmatpush1.msra.mxu0 0.0
  %1331 = vmatprep.subr.mxu0 0.0
  %1332 = vmatpush1.msra.mxu0 0.0
  %1333 = vmatprep.subr.mxu0 0.0
  %1334 = vmatpush1.msra.mxu0 0.0
  %1335 = vmatprep.subr.mxu0 0.0
  %1336 = vmatpush1.msra.mxu0 0.0
  %1337 = vmatprep.subr.mxu0 0.0
  %1338 = vmatpush1.msra.mxu0 0.0
  %1339 = vmatprep.subr.mxu0 0.0
  %1340 = vmatpush1.msra.mxu0 0.0
  %1341 = vmatprep.subr.mxu0 0.0
  %1342 = vmatpush1.msra.mxu0 0.0
  %1343 = vmatprep.subr.mxu0 0.0
  %1344 = vmatpush1.msra.mxu0 0.0
  %1345 = vmatprep.subr.mxu0 0.0
  %1346 = vmatpush1.msra.mxu0 0.0
  %1347 = vmatprep.subr.mxu0 0.0
  %1348 = vmatpush1.msra.mxu0 0.0
  %1349 = vmatprep.subr.mxu0 0.0
  %1350 = vmatpush1.msra.mxu0 0.0
  %1351 = vmatprep.subr.mxu0 0.0
  %1352 = vmatpush1.msra.mxu0 0.0
  %1353 = vmatprep.subr.mxu0 0.0
  %1354 = vmatpush1.msra.mxu0 0.0
  %1355 = vmatprep.subr.mxu0 0.0
  %1356 = vmatpush1.msra.mxu0 0.0
  %1357 = vmatprep.subr.mxu0 0.0
  %1358 = vmatpush1.msra.mxu0 0.0
  %1359 = vmatprep.subr.mxu0 0.0
  %1360 = vmatpush1.msra.mxu0 0.0
  %1361 = vmatprep.subr.mxu0 0.0
  %1362 = vmatpush1.msra.mxu0 0.0
  %1363 = vmatprep.subr.mxu0 0.0
  %1364 = vmatpush1.msra.mxu0 0.0
  %1365 = vmatprep.subr.mxu0 0.0
  %1366 = vmatpush1.msra.mxu0 0.0
  %1367 = vmatprep.subr.mxu0 0.0
  %1368 = vmatpush1.msra.mxu0 0.0
  %1369 = vmatprep.subr.mxu0 0.0
  %1370 = vmatpush1.msra.mxu0 0.0
  %1371 = vmatprep.mubr.f32.mxu0 0.0
  %1372 = vmatmul.mubr.f32.gmra.mrb[0].mxu0 %v1305
  %v1373 = vpop.f32.mrb[0].mxu0
  %v1374 = vadd.f32 %v1302, %v1373
  %v1375 = vpop.f32.mrb[0].mxu0
  %1376 = vdwg.mxu0
  %1377 = vst [vmem:[%s9] sm:$0xff] %v1374
  // Predicated region
  $region38: #{lstmnet_forward.1} parent=0 // pred_check
    _
  $region39: #{lstmnet_forward.1} parent=0 // pred_check_branch
    %1379 = sbr.rel (0) target = $region41
  $region40: #{lstmnet_forward.1} parent=0 // pred_region
    _
  $region41: #{lstmnet_forward.1} parent=0 // pred_fallthru
    _
  // Predicated region
  $region42: #{lstmnet_forward.1} parent=0 // pred_check
    _
  $region43: #{lstmnet_forward.1} parent=0 // pred_check_branch
    %1381 = sbr.rel (0) target = $region45
  $region44: #{lstmnet_forward.1} parent=0 // pred_region
    _
  $region45: #{lstmnet_forward.1} parent=0 // pred_fallthru
    _

</llo_original>
